<compile_context>
chip_gen: v7x
topology: tpu7x:2x2x1
jax: 0.10.0
libtpu: 0.0.40
codegen_flags: <defaults>
</compile_context>

<pallas_src>
import functools

import jax
import jax.numpy as jnp
import numpy as np
from jax.experimental import pallas as pl
from jax.experimental.pallas import tpu as pltpu


def _wsconvt_kernel(kW, S, x_ref, w_ref, b_ref, o_ref):
    # x_ref: (1, Cin, P)    bf16  zero-padded image, spatial flattened (P = Hp*S)
    # w_ref: (T, Cout, Cin) bf16  flipped / IO-swapped / scale-folded weight taps
    # b_ref: (Cout, 1)      f32   bias
    # o_ref: (1, Cout, M)   f32   wide output (M = Ho*S; junk cols sliced outside)
    T, Cout, _ = w_ref.shape
    M = o_ref.shape[2]
    acc = jnp.zeros((Cout, M), dtype=jnp.float32)
    for t in range(T):                       # unrolled: kH*kW static taps
        kh, kw = divmod(t, kW)
        d = kh * S + kw                      # static flat shift for this tap
        acc = acc + jnp.dot(w_ref[t], x_ref[0, :, d:d + M],
                            preferred_element_type=jnp.float32)
    o_ref[0] = acc + b_ref[...]


def ws_conv_transpose2d(x, weight, bias, *, stride=(1, 1), padding=(0, 0), gain=2):
    """x: (N, Cin, H, W); weight: (Cin, Cout, kH, kW)  [PyTorch ConvTranspose2d];
    bias: (Cout,).  Returns (N, Cout, Ho, Wo) with Ho = H + kH - 1 (stride 1, pad 0)."""
    assert stride == (1, 1) and padding == (0, 0), "module default config only"
    # TODO(synk): general stride/padding would need lhs-dilation of the input.
    N, Cin, H, W = x.shape
    cin_w, Cout, kH, kW = weight.shape
    assert cin_w == Cin
    scale = float((gain / (Cin * kH ** 2)) ** 0.5)   # matches module: kernel_size[0]**2

    Ho, Wo = H + kH - 1, W + kW - 1
    S = W + 2 * (kW - 1)            # padded row stride (>= Wo + kW - 1)
    Hp = Ho + kH                    # padded height (+1 spare row for the kw overhang)
    M = Ho * S                      # "wide" output pixels per image

    # ---- cheap glue (all NCHW, no transposes): zero-pad, flatten spatial ----
    xp = jnp.pad(x, ((0, 0), (0, 0), (kH - 1, kH), (kW - 1, kW - 1)))
    xflat = xp.reshape(N, Cin, Hp * S).astype(jnp.bfloat16)

    # w3[kh*kW + kw, oc, ic] = scale * W[ic, oc, kH-1-kh, kW-1-kw]
    w3 = (jnp.transpose(weight[:, :, ::-1, ::-1], (2, 3, 1, 0))
          .reshape(kH * kW, Cout, Cin) * scale).astype(jnp.bfloat16)
    b2 = bias.reshape(Cout, 1).astype(jnp.float32)

    kernel = functools.partial(_wsconvt_kernel, kW, S)
    out = pl.pallas_call(
        kernel,
        out_shape=jax.ShapeDtypeStruct((N, Cout, M), jnp.float32),
        grid_spec=pltpu.PrefetchScalarGridSpec(
            num_scalar_prefetch=0,
            grid=(N,),
            in_specs=[
                pl.BlockSpec((1, Cin, Hp * S), lambda n: (n, 0, 0)),
                pl.BlockSpec((kH * kW, Cout, Cin), lambda n: (0, 0, 0)),
                pl.BlockSpec((Cout, 1), lambda n: (0, 0)),
            ],
            out_specs=pl.BlockSpec((1, Cout, M), lambda n: (n, 0, 0)),
        ),
        compiler_params=pltpu.CompilerParams(
            dimension_semantics=("parallel",)),
    )(xflat, w3, b2)

    # drop junk columns; already NCHW, so only a reshape + slice (no transpose).
    return out.reshape(N, Cout, Ho, S)[:, :, :, :Wo]


if __name__ == "__main__":
    key = jax.random.PRNGKey(0)
    kx, kw_ = jax.random.split(key)

    # small shapes consistent with the module: NCHW input, ConvTranspose2d(4->8, k=4)
    N, Cin, H, W = 2, 4, 16, 16
    Cout, kH, kW = 8, 4, 4

    x = jax.random.normal(kx, (N, Cin, H, W), dtype=jnp.float32)
    weight = jax.random.normal(kw_, (Cin, Cout, kH, kW), dtype=jnp.float32)  # nn.init.normal_
    bias = jnp.zeros((Cout,), dtype=jnp.float32)                             # nn.init.zeros_

    y = jax.block_until_ready(ws_conv_transpose2d(x, weight, bias))
    assert y.shape == (N, Cout, H + kH - 1, W + kW - 1)

    # reference: same math via XLA conv, using the same bf16 quantization of x and of
    # the scale-folded weight that the kernel uses, so the check isolates the kernel.
    scale = (2.0 / (Cin * kH ** 2)) ** 0.5
    xq = x.astype(jnp.bfloat16).astype(jnp.float32)
    wq = (weight * scale).astype(jnp.bfloat16).astype(jnp.float32)
    wf_oihw = jnp.transpose(wq[:, :, ::-1, ::-1], (1, 0, 2, 3))
    ref = jax.lax.conv_general_dilated(
        xq, wf_oihw, window_strides=(1, 1),
        padding=[(kH - 1, kH - 1), (kW - 1, kW - 1)],
        dimension_numbers=("NCHW", "OIHW", "NCHW")) + bias.reshape(1, Cout, 1, 1)

    np.testing.assert_allclose(np.asarray(y), np.asarray(ref), rtol=5e-3, atol=5e-3)
    print("KERNEL_OK")
</pallas_src>

<mosaic_0001>
module attributes {stable_mosaic.version = 11 : i64} {
  func.func @_wsconvt_kernel(%arg0: i32, %arg1: memref<1x4x506xbf16, #tpu.memory_space<vmem>>, %arg2: memref<16x8x4xbf16, #tpu.memory_space<vmem>>, %arg3: memref<8x1xf32, #tpu.memory_space<vmem>>, %arg4: memref<1x8x418xf32, #tpu.memory_space<vmem>>) attributes {dimension_semantics = [#tpu.dimension_semantics<parallel>], iteration_bounds = array<i64: 2>, scalar_prefetch = 0 : i64, scratch_operands = 0 : i64, tpu.core_type = #tpu.core_type<tc>, window_params = [{transform_indices = @transform_0, window_bounds = array<i64: 1, 4, 506>}, {pipeline_mode = #tpu.pipeline_mode<synchronous>, transform_indices = @transform_1, window_bounds = array<i64: 16, 8, 4>}, {pipeline_mode = #tpu.pipeline_mode<synchronous>, transform_indices = @transform_2, window_bounds = array<i64: 8, 1>}, {transform_indices = @transform_3, window_bounds = array<i64: 1, 8, 418>}]} {
    %cst = arith.constant 0.000000e+00 : f32
    %0 = vector.broadcast %cst : f32 to vector<8x418xf32>
    %c0 = arith.constant 0 : index
    %c0_0 = arith.constant 0 : index
    %c0_1 = arith.constant 0 : index
    %1 = vector.load %arg2[%c0, %c0_0, %c0_1] : memref<16x8x4xbf16, #tpu.memory_space<vmem>>, vector<1x8x4xbf16>
    %2 = vector.shape_cast %1 : vector<1x8x4xbf16> to vector<8x4xbf16>
    %c0_2 = arith.constant 0 : index
    %c0_3 = arith.constant 0 : index
    %c0_4 = arith.constant 0 : index
    %3 = vector.load %arg1[%c0_2, %c0_3, %c0_4] : memref<1x4x506xbf16, #tpu.memory_space<vmem>>, vector<1x4x418xbf16>
    %4 = vector.shape_cast %3 : vector<1x4x418xbf16> to vector<4x418xbf16>
    %cst_5 = arith.constant dense<0.000000e+00> : vector<8x418xf32>
    %5 = tpu.matmul %2, %4, %cst_5 {dimension_numbers = #tpu.dot_dimension_numbers<[1], [0], [0], [1], [0, 0, 1, 1], [], []>} : vector<8x4xbf16>, vector<4x418xbf16>, vector<8x418xf32> -> vector<8x418xf32>
    %6 = arith.addf %0, %5 : vector<8x418xf32>
    %c1 = arith.constant 1 : index
    %c0_6 = arith.constant 0 : index
    %c0_7 = arith.constant 0 : index
    %7 = vector.load %arg2[%c1, %c0_6, %c0_7] : memref<16x8x4xbf16, #tpu.memory_space<vmem>>, vector<1x8x4xbf16>
    %8 = vector.shape_cast %7 : vector<1x8x4xbf16> to vector<8x4xbf16>
    %c0_8 = arith.constant 0 : index
    %c0_9 = arith.constant 0 : index
    %c1_10 = arith.constant 1 : index
    %9 = vector.load %arg1[%c0_8, %c0_9, %c1_10] : memref<1x4x506xbf16, #tpu.memory_space<vmem>>, vector<1x4x418xbf16>
    %10 = vector.shape_cast %9 : vector<1x4x418xbf16> to vector<4x418xbf16>
    %cst_11 = arith.constant dense<0.000000e+00> : vector<8x418xf32>
    %11 = tpu.matmul %8, %10, %cst_11 {dimension_numbers = #tpu.dot_dimension_numbers<[1], [0], [0], [1], [0, 0, 1, 1], [], []>} : vector<8x4xbf16>, vector<4x418xbf16>, vector<8x418xf32> -> vector<8x418xf32>
    %12 = arith.addf %6, %11 : vector<8x418xf32>
    %c2 = arith.constant 2 : index
    %c0_12 = arith.constant 0 : index
    %c0_13 = arith.constant 0 : index
    %13 = vector.load %arg2[%c2, %c0_12, %c0_13] : memref<16x8x4xbf16, #tpu.memory_space<vmem>>, vector<1x8x4xbf16>
    %14 = vector.shape_cast %13 : vector<1x8x4xbf16> to vector<8x4xbf16>
    %c0_14 = arith.constant 0 : index
    %c0_15 = arith.constant 0 : index
    %c2_16 = arith.constant 2 : index
    %15 = vector.load %arg1[%c0_14, %c0_15, %c2_16] : memref<1x4x506xbf16, #tpu.memory_space<vmem>>, vector<1x4x418xbf16>
    %16 = vector.shape_cast %15 : vector<1x4x418xbf16> to vector<4x418xbf16>
    %cst_17 = arith.constant dense<0.000000e+00> : vector<8x418xf32>
    %17 = tpu.matmul %14, %16, %cst_17 {dimension_numbers = #tpu.dot_dimension_numbers<[1], [0], [0], [1], [0, 0, 1, 1], [], []>} : vector<8x4xbf16>, vector<4x418xbf16>, vector<8x418xf32> -> vector<8x418xf32>
    %18 = arith.addf %12, %17 : vector<8x418xf32>
    %c3 = arith.constant 3 : index
    %c0_18 = arith.constant 0 : index
    %c0_19 = arith.constant 0 : index
    %19 = vector.load %arg2[%c3, %c0_18, %c0_19] : memref<16x8x4xbf16, #tpu.memory_space<vmem>>, vector<1x8x4xbf16>
    %20 = vector.shape_cast %19 : vector<1x8x4xbf16> to vector<8x4xbf16>
    %c0_20 = arith.constant 0 : index
    %c0_21 = arith.constant 0 : index
    %c3_22 = arith.constant 3 : index
    %21 = vector.load %arg1[%c0_20, %c0_21, %c3_22] : memref<1x4x506xbf16, #tpu.memory_space<vmem>>, vector<1x4x418xbf16>
    %22 = vector.shape_cast %21 : vector<1x4x418xbf16> to vector<4x418xbf16>
    %cst_23 = arith.constant dense<0.000000e+00> : vector<8x418xf32>
    %23 = tpu.matmul %20, %22, %cst_23 {dimension_numbers = #tpu.dot_dimension_numbers<[1], [0], [0], [1], [0, 0, 1, 1], [], []>} : vector<8x4xbf16>, vector<4x418xbf16>, vector<8x418xf32> -> vector<8x418xf32>
    %24 = arith.addf %18, %23 : vector<8x418xf32>
    %c4 = arith.constant 4 : index
    %c0_24 = arith.constant 0 : index
    %c0_25 = arith.constant 0 : index
    %25 = vector.load %arg2[%c4, %c0_24, %c0_25] : memref<16x8x4xbf16, #tpu.memory_space<vmem>>, vector<1x8x4xbf16>
    %26 = vector.shape_cast %25 : vector<1x8x4xbf16> to vector<8x4xbf16>
    %c0_26 = arith.constant 0 : index
    %c0_27 = arith.constant 0 : index
    %c22 = arith.constant 22 : index
    %27 = vector.load %arg1[%c0_26, %c0_27, %c22] : memref<1x4x506xbf16, #tpu.memory_space<vmem>>, vector<1x4x418xbf16>
    %28 = vector.shape_cast %27 : vector<1x4x418xbf16> to vector<4x418xbf16>
    %cst_28 = arith.constant dense<0.000000e+00> : vector<8x418xf32>
    %29 = tpu.matmul %26, %28, %cst_28 {dimension_numbers = #tpu.dot_dimension_numbers<[1], [0], [0], [1], [0, 0, 1, 1], [], []>} : vector<8x4xbf16>, vector<4x418xbf16>, vector<8x418xf32> -> vector<8x418xf32>
    %30 = arith.addf %24, %29 : vector<8x418xf32>
    %c5 = arith.constant 5 : index
    %c0_29 = arith.constant 0 : index
    %c0_30 = arith.constant 0 : index
    %31 = vector.load %arg2[%c5, %c0_29, %c0_30] : memref<16x8x4xbf16, #tpu.memory_space<vmem>>, vector<1x8x4xbf16>
    %32 = vector.shape_cast %31 : vector<1x8x4xbf16> to vector<8x4xbf16>
    %c0_31 = arith.constant 0 : index
    %c0_32 = arith.constant 0 : index
    %c23 = arith.constant 23 : index
    %33 = vector.load %arg1[%c0_31, %c0_32, %c23] : memref<1x4x506xbf16, #tpu.memory_space<vmem>>, vector<1x4x418xbf16>
    %34 = vector.shape_cast %33 : vector<1x4x418xbf16> to vector<4x418xbf16>
    %cst_33 = arith.constant dense<0.000000e+00> : vector<8x418xf32>
    %35 = tpu.matmul %32, %34, %cst_33 {dimension_numbers = #tpu.dot_dimension_numbers<[1], [0], [0], [1], [0, 0, 1, 1], [], []>} : vector<8x4xbf16>, vector<4x418xbf16>, vector<8x418xf32> -> vector<8x418xf32>
    %36 = arith.addf %30, %35 : vector<8x418xf32>
    %c6 = arith.constant 6 : index
    %c0_34 = arith.constant 0 : index
    %c0_35 = arith.constant 0 : index
    %37 = vector.load %arg2[%c6, %c0_34, %c0_35] : memref<16x8x4xbf16, #tpu.memory_space<vmem>>, vector<1x8x4xbf16>
    %38 = vector.shape_cast %37 : vector<1x8x4xbf16> to vector<8x4xbf16>
    %c0_36 = arith.constant 0 : index
    %c0_37 = arith.constant 0 : index
    %c24 = arith.constant 24 : index
    %39 = vector.load %arg1[%c0_36, %c0_37, %c24] : memref<1x4x506xbf16, #tpu.memory_space<vmem>>, vector<1x4x418xbf16>
    %40 = vector.shape_cast %39 : vector<1x4x418xbf16> to vector<4x418xbf16>
    %cst_38 = arith.constant dense<0.000000e+00> : vector<8x418xf32>
    %41 = tpu.matmul %38, %40, %cst_38 {dimension_numbers = #tpu.dot_dimension_numbers<[1], [0], [0], [1], [0, 0, 1, 1], [], []>} : vector<8x4xbf16>, vector<4x418xbf16>, vector<8x418xf32> -> vector<8x418xf32>
    %42 = arith.addf %36, %41 : vector<8x418xf32>
    %c7 = arith.constant 7 : index
    %c0_39 = arith.constant 0 : index
    %c0_40 = arith.constant 0 : index
    %43 = vector.load %arg2[%c7, %c0_39, %c0_40] : memref<16x8x4xbf16, #tpu.memory_space<vmem>>, vector<1x8x4xbf16>
    %44 = vector.shape_cast %43 : vector<1x8x4xbf16> to vector<8x4xbf16>
    %c0_41 = arith.constant 0 : index
    %c0_42 = arith.constant 0 : index
    %c25 = arith.constant 25 : index
    %45 = vector.load %arg1[%c0_41, %c0_42, %c25] : memref<1x4x506xbf16, #tpu.memory_space<vmem>>, vector<1x4x418xbf16>
    %46 = vector.shape_cast %45 : vector<1x4x418xbf16> to vector<4x418xbf16>
    %cst_43 = arith.constant dense<0.000000e+00> : vector<8x418xf32>
    %47 = tpu.matmul %44, %46, %cst_43 {dimension_numbers = #tpu.dot_dimension_numbers<[1], [0], [0], [1], [0, 0, 1, 1], [], []>} : vector<8x4xbf16>, vector<4x418xbf16>, vector<8x418xf32> -> vector<8x418xf32>
    %48 = arith.addf %42, %47 : vector<8x418xf32>
    %c8 = arith.constant 8 : index
    %c0_44 = arith.constant 0 : index
    %c0_45 = arith.constant 0 : index
    %49 = vector.load %arg2[%c8, %c0_44, %c0_45] : memref<16x8x4xbf16, #tpu.memory_space<vmem>>, vector<1x8x4xbf16>
    %50 = vector.shape_cast %49 : vector<1x8x4xbf16> to vector<8x4xbf16>
    %c0_46 = arith.constant 0 : index
    %c0_47 = arith.constant 0 : index
    %c44 = arith.constant 44 : index
    %51 = vector.load %arg1[%c0_46, %c0_47, %c44] : memref<1x4x506xbf16, #tpu.memory_space<vmem>>, vector<1x4x418xbf16>
    %52 = vector.shape_cast %51 : vector<1x4x418xbf16> to vector<4x418xbf16>
    %cst_48 = arith.constant dense<0.000000e+00> : vector<8x418xf32>
    %53 = tpu.matmul %50, %52, %cst_48 {dimension_numbers = #tpu.dot_dimension_numbers<[1], [0], [0], [1], [0, 0, 1, 1], [], []>} : vector<8x4xbf16>, vector<4x418xbf16>, vector<8x418xf32> -> vector<8x418xf32>
    %54 = arith.addf %48, %53 : vector<8x418xf32>
    %c9 = arith.constant 9 : index
    %c0_49 = arith.constant 0 : index
    %c0_50 = arith.constant 0 : index
    %55 = vector.load %arg2[%c9, %c0_49, %c0_50] : memref<16x8x4xbf16, #tpu.memory_space<vmem>>, vector<1x8x4xbf16>
    %56 = vector.shape_cast %55 : vector<1x8x4xbf16> to vector<8x4xbf16>
    %c0_51 = arith.constant 0 : index
    %c0_52 = arith.constant 0 : index
    %c45 = arith.constant 45 : index
    %57 = vector.load %arg1[%c0_51, %c0_52, %c45] : memref<1x4x506xbf16, #tpu.memory_space<vmem>>, vector<1x4x418xbf16>
    %58 = vector.shape_cast %57 : vector<1x4x418xbf16> to vector<4x418xbf16>
    %cst_53 = arith.constant dense<0.000000e+00> : vector<8x418xf32>
    %59 = tpu.matmul %56, %58, %cst_53 {dimension_numbers = #tpu.dot_dimension_numbers<[1], [0], [0], [1], [0, 0, 1, 1], [], []>} : vector<8x4xbf16>, vector<4x418xbf16>, vector<8x418xf32> -> vector<8x418xf32>
    %60 = arith.addf %54, %59 : vector<8x418xf32>
    %c10 = arith.constant 10 : index
    %c0_54 = arith.constant 0 : index
    %c0_55 = arith.constant 0 : index
    %61 = vector.load %arg2[%c10, %c0_54, %c0_55] : memref<16x8x4xbf16, #tpu.memory_space<vmem>>, vector<1x8x4xbf16>
    %62 = vector.shape_cast %61 : vector<1x8x4xbf16> to vector<8x4xbf16>
    %c0_56 = arith.constant 0 : index
    %c0_57 = arith.constant 0 : index
    %c46 = arith.constant 46 : index
    %63 = vector.load %arg1[%c0_56, %c0_57, %c46] : memref<1x4x506xbf16, #tpu.memory_space<vmem>>, vector<1x4x418xbf16>
    %64 = vector.shape_cast %63 : vector<1x4x418xbf16> to vector<4x418xbf16>
    %cst_58 = arith.constant dense<0.000000e+00> : vector<8x418xf32>
    %65 = tpu.matmul %62, %64, %cst_58 {dimension_numbers = #tpu.dot_dimension_numbers<[1], [0], [0], [1], [0, 0, 1, 1], [], []>} : vector<8x4xbf16>, vector<4x418xbf16>, vector<8x418xf32> -> vector<8x418xf32>
    %66 = arith.addf %60, %65 : vector<8x418xf32>
    %c11 = arith.constant 11 : index
    %c0_59 = arith.constant 0 : index
    %c0_60 = arith.constant 0 : index
    %67 = vector.load %arg2[%c11, %c0_59, %c0_60] : memref<16x8x4xbf16, #tpu.memory_space<vmem>>, vector<1x8x4xbf16>
    %68 = vector.shape_cast %67 : vector<1x8x4xbf16> to vector<8x4xbf16>
    %c0_61 = arith.constant 0 : index
    %c0_62 = arith.constant 0 : index
    %c47 = arith.constant 47 : index
    %69 = vector.load %arg1[%c0_61, %c0_62, %c47] : memref<1x4x506xbf16, #tpu.memory_space<vmem>>, vector<1x4x418xbf16>
    %70 = vector.shape_cast %69 : vector<1x4x418xbf16> to vector<4x418xbf16>
    %cst_63 = arith.constant dense<0.000000e+00> : vector<8x418xf32>
    %71 = tpu.matmul %68, %70, %cst_63 {dimension_numbers = #tpu.dot_dimension_numbers<[1], [0], [0], [1], [0, 0, 1, 1], [], []>} : vector<8x4xbf16>, vector<4x418xbf16>, vector<8x418xf32> -> vector<8x418xf32>
    %72 = arith.addf %66, %71 : vector<8x418xf32>
    %c12 = arith.constant 12 : index
    %c0_64 = arith.constant 0 : index
    %c0_65 = arith.constant 0 : index
    %73 = vector.load %arg2[%c12, %c0_64, %c0_65] : memref<16x8x4xbf16, #tpu.memory_space<vmem>>, vector<1x8x4xbf16>
    %74 = vector.shape_cast %73 : vector<1x8x4xbf16> to vector<8x4xbf16>
    %c0_66 = arith.constant 0 : index
    %c0_67 = arith.constant 0 : index
    %c66 = arith.constant 66 : index
    %75 = vector.load %arg1[%c0_66, %c0_67, %c66] : memref<1x4x506xbf16, #tpu.memory_space<vmem>>, vector<1x4x418xbf16>
    %76 = vector.shape_cast %75 : vector<1x4x418xbf16> to vector<4x418xbf16>
    %cst_68 = arith.constant dense<0.000000e+00> : vector<8x418xf32>
    %77 = tpu.matmul %74, %76, %cst_68 {dimension_numbers = #tpu.dot_dimension_numbers<[1], [0], [0], [1], [0, 0, 1, 1], [], []>} : vector<8x4xbf16>, vector<4x418xbf16>, vector<8x418xf32> -> vector<8x418xf32>
    %78 = arith.addf %72, %77 : vector<8x418xf32>
    %c13 = arith.constant 13 : index
    %c0_69 = arith.constant 0 : index
    %c0_70 = arith.constant 0 : index
    %79 = vector.load %arg2[%c13, %c0_69, %c0_70] : memref<16x8x4xbf16, #tpu.memory_space<vmem>>, vector<1x8x4xbf16>
    %80 = vector.shape_cast %79 : vector<1x8x4xbf16> to vector<8x4xbf16>
    %c0_71 = arith.constant 0 : index
    %c0_72 = arith.constant 0 : index
    %c67 = arith.constant 67 : index
    %81 = vector.load %arg1[%c0_71, %c0_72, %c67] : memref<1x4x506xbf16, #tpu.memory_space<vmem>>, vector<1x4x418xbf16>
    %82 = vector.shape_cast %81 : vector<1x4x418xbf16> to vector<4x418xbf16>
    %cst_73 = arith.constant dense<0.000000e+00> : vector<8x418xf32>
    %83 = tpu.matmul %80, %82, %cst_73 {dimension_numbers = #tpu.dot_dimension_numbers<[1], [0], [0], [1], [0, 0, 1, 1], [], []>} : vector<8x4xbf16>, vector<4x418xbf16>, vector<8x418xf32> -> vector<8x418xf32>
    %84 = arith.addf %78, %83 : vector<8x418xf32>
    %c14 = arith.constant 14 : index
    %c0_74 = arith.constant 0 : index
    %c0_75 = arith.constant 0 : index
    %85 = vector.load %arg2[%c14, %c0_74, %c0_75] : memref<16x8x4xbf16, #tpu.memory_space<vmem>>, vector<1x8x4xbf16>
    %86 = vector.shape_cast %85 : vector<1x8x4xbf16> to vector<8x4xbf16>
    %c0_76 = arith.constant 0 : index
    %c0_77 = arith.constant 0 : index
    %c68 = arith.constant 68 : index
    %87 = vector.load %arg1[%c0_76, %c0_77, %c68] : memref<1x4x506xbf16, #tpu.memory_space<vmem>>, vector<1x4x418xbf16>
    %88 = vector.shape_cast %87 : vector<1x4x418xbf16> to vector<4x418xbf16>
    %cst_78 = arith.constant dense<0.000000e+00> : vector<8x418xf32>
    %89 = tpu.matmul %86, %88, %cst_78 {dimension_numbers = #tpu.dot_dimension_numbers<[1], [0], [0], [1], [0, 0, 1, 1], [], []>} : vector<8x4xbf16>, vector<4x418xbf16>, vector<8x418xf32> -> vector<8x418xf32>
    %90 = arith.addf %84, %89 : vector<8x418xf32>
    %c15 = arith.constant 15 : index
    %c0_79 = arith.constant 0 : index
    %c0_80 = arith.constant 0 : index
    %91 = vector.load %arg2[%c15, %c0_79, %c0_80] : memref<16x8x4xbf16, #tpu.memory_space<vmem>>, vector<1x8x4xbf16>
    %92 = vector.shape_cast %91 : vector<1x8x4xbf16> to vector<8x4xbf16>
    %c0_81 = arith.constant 0 : index
    %c0_82 = arith.constant 0 : index
    %c69 = arith.constant 69 : index
    %93 = vector.load %arg1[%c0_81, %c0_82, %c69] : memref<1x4x506xbf16, #tpu.memory_space<vmem>>, vector<1x4x418xbf16>
    %94 = vector.shape_cast %93 : vector<1x4x418xbf16> to vector<4x418xbf16>
    %cst_83 = arith.constant dense<0.000000e+00> : vector<8x418xf32>
    %95 = tpu.matmul %92, %94, %cst_83 {dimension_numbers = #tpu.dot_dimension_numbers<[1], [0], [0], [1], [0, 0, 1, 1], [], []>} : vector<8x4xbf16>, vector<4x418xbf16>, vector<8x418xf32> -> vector<8x418xf32>
    %96 = arith.addf %90, %95 : vector<8x418xf32>
    %c0_84 = arith.constant 0 : index
    %c0_85 = arith.constant 0 : index
    %97 = vector.load %arg3[%c0_84, %c0_85] : memref<8x1xf32, #tpu.memory_space<vmem>>, vector<8x1xf32>
    %98 = vector.broadcast %97 : vector<8x1xf32> to vector<8x418xf32>
    %99 = arith.addf %96, %98 : vector<8x418xf32>
    %c0_86 = arith.constant 0 : index
    %c0_87 = arith.constant 0 : index
    %c0_88 = arith.constant 0 : index
    %100 = vector.load %arg4[%c0_86, %c0_87, %c0_88] : memref<1x8x418xf32, #tpu.memory_space<vmem>>, vector<1x8x418xf32>
    %101 = vector.shape_cast %100 : vector<1x8x418xf32> to vector<8x418xf32>
    %102 = vector.shape_cast %99 : vector<8x418xf32> to vector<1x8x418xf32>
    tpu.vector_store %arg4[%c0_86, %c0_87, %c0_88], %102 {strides = array<i32>} : memref<1x8x418xf32, #tpu.memory_space<vmem>>, vector<1x8x418xf32>,
    return
  }
  func.func @transform_0(%arg0: i32) -> (i32, i32, i32) {
    %c0_i32 = arith.constant 0 : i32
    %c0_i32_0 = arith.constant 0 : i32
    %c0_i32_1 = arith.constant 0 : i32
    return %arg0, %c0_i32, %c0_i32_0 : i32, i32, i32
  }
  func.func @transform_1(%arg0: i32) -> (i32, i32, i32) {
    %c0_i32 = arith.constant 0 : i32
    %c0_i32_0 = arith.constant 0 : i32
    %c0_i32_1 = arith.constant 0 : i32
    %c0_i32_2 = arith.constant 0 : i32
    return %c0_i32, %c0_i32_0, %c0_i32_1 : i32, i32, i32
  }
  func.func @transform_2(%arg0: i32) -> (i32, i32) {
    %c0_i32 = arith.constant 0 : i32
    %c0_i32_0 = arith.constant 0 : i32
    %c0_i32_1 = arith.constant 0 : i32
    return %c0_i32, %c0_i32_0 : i32, i32
  }
  func.func @transform_3(%arg0: i32) -> (i32, i32, i32) {
    %c0_i32 = arith.constant 0 : i32
    %c0_i32_0 = arith.constant 0 : i32
    %c0_i32_1 = arith.constant 0 : i32
    return %arg0, %c0_i32, %c0_i32_0 : i32, i32, i32
  }
}

</mosaic_0001>

<llo_original>
// kernel: tpu_custom_call.1
$region0: #{tpu_custom_call.1}
  #allocation0 [shape = 'u32[]', space=smem, size = 0x4, offset = 0x4, fixed_abs, tag = 'smem constant byte address 0x4 - core index']
  #allocation1 [shape = 'u32[144,128]{1,0:T(1,128)}', space=vmem, size = 0x12000, scoped, tag = 'internal scratch']
  %s0 = inlined_call_operand.vmem [shape: bf16[2,4,506], index: 0, kind: input, shape index: {}]
  %s1 = inlined_call_operand.vmem [shape: bf16[16,8,4], index: 1, kind: input, shape index: {}]
  %s2 = inlined_call_operand.vmem [shape: f32[8,1], index: 2, kind: input, shape index: {}]
  %s3 = inlined_call_operand.hbm [shape: f32[2,8,418], index: 3, kind: output, shape index: {}]
  %s4 = sld [smem:[#allocation0]]
  $region45: #{tpu_custom_call.1} parent=0
    _
  %s6 = ssub.s32 1, %s4
  %s7 = scalar_select 0, %s6, %s4
  $region1: #{tpu_custom_call.1} parent=0
    #allocation2 [shape = 'u8[32768]{0}', space=vmem, size = 0x8000, scoped, tag = 'output window, operand 0']
    #allocation3 [shape = 's32[2]{0}', space=sflag, size = 0x8, scoped, tag = 'scoped memory for tpu_custom_call.1']
    %8 = vsyncpa [#allocation3], 0
    %s9 = scalar_lea.sflag [#allocation3], 1
    %10 = vsyncpa %s9, 0
    loop: start=0, step=1, limit=4
    $region2: #{tpu_custom_call.1} parent=1 // loop_pre_header
      _
    $region3: #{tpu_custom_call.1} parent=1 // loop_header
      %s12 = sphi 0, %s16
      %p13 = scmp.ge.s32.totalorder %s12, 4
      %s22 = sphi 0, %s24
      %s25 = sphi 0, %s22
      %s26 = sphi 0, %s25
      %s42 = sphi 0, %s26
      %s46 = sphi 0, %s46
      %s48 = sphi 0, %s46
      %s49 = sphi 0, %s48
      %s63 = sphi 0, %s49
      %s67 = sphi 0, %s67
      %s69 = sphi 0, %s67
      %s70 = sphi 0, %s69
      %s84 = sphi 0, %s70
      %s90 = sphi 0, %s92
      %s93 = sphi 0, %s90
      %s94 = sphi 0, %s93
      %s110 = sphi 0, %s94
    $region4: #{tpu_custom_call.1} parent=1 // loop_header_branch
      %15 = sbr.rel (%p13) target = $region8
    $region5: #{tpu_custom_call.1} parent=1 // loop_body
      %s17 = ssub.s32 %s12, 1
      %s18 = ssub.s32 %s12, 2
      %s19 = sadd.s32 %s12, 1
      %s20 = ssub.s32 %s12, %s19
      %p21 = scmp.eq.s32.totalorder %s20, 0
      %s23 = sadd.s32 %s22, 1
      %s24 = scalar_select %p21, %s22, %s23
      %p27 = pneg %p21
      %p28 = scmp.eq.s32.totalorder %s12, 1
      %p29 = por %p27, %p28
      %p30 = scmp.ne.s32.totalorder %s22, %s25
      %p31 = scmp.eq.s32.totalorder %s12, 0
      %p32 = por %p30, %p31
      %p33 = scmp.ne.s32.totalorder %s22, %s25
      %p34 = scmp.eq.s32.totalorder %s17, 1
      %p35 = por %p33, %p34
      %p36 = scmp.ne.s32.totalorder %s25, %s26
      %p37 = scmp.eq.s32.totalorder %s17, 0
      %p38 = por %p36, %p37
      %p39 = scmp.ne.s32.totalorder %s25, %s26
      %p40 = scmp.eq.s32.totalorder %s18, 1
      %p41 = por %p39, %p40
      %p43 = scmp.ne.s32.totalorder %s26, %s42
      %p44 = scmp.eq.s32.totalorder %s18, 0
      %p45 = por %p43, %p44
      %s47 = sadd.s32 %s46, 1
      %p50 = scmp.eq.s32.totalorder %s12, 1
      %p51 = scmp.ne.s32.totalorder %s46, %s48
      %p52 = scmp.eq.s32.totalorder %s12, 0
      %p53 = por %p51, %p52
      %p54 = scmp.ne.s32.totalorder %s46, %s48
      %p55 = scmp.eq.s32.totalorder %s17, 1
      %p56 = por %p54, %p55
      %p57 = scmp.ne.s32.totalorder %s48, %s49
      %p58 = scmp.eq.s32.totalorder %s17, 0
      %p59 = por %p57, %p58
      %p60 = scmp.ne.s32.totalorder %s48, %s49
      %p61 = scmp.eq.s32.totalorder %s18, 1
      %p62 = por %p60, %p61
      %p64 = scmp.ne.s32.totalorder %s49, %s63
      %p65 = scmp.eq.s32.totalorder %s18, 0
      %p66 = por %p64, %p65
      %s68 = sadd.s32 %s67, 1
      %p71 = scmp.eq.s32.totalorder %s12, 1
      %p72 = scmp.ne.s32.totalorder %s67, %s69
      %p73 = scmp.eq.s32.totalorder %s12, 0
      %p74 = por %p72, %p73
      %p75 = scmp.ne.s32.totalorder %s67, %s69
      %p76 = scmp.eq.s32.totalorder %s17, 1
      %p77 = por %p75, %p76
      %p78 = scmp.ne.s32.totalorder %s69, %s70
      %p79 = scmp.eq.s32.totalorder %s17, 0
      %p80 = por %p78, %p79
      %p81 = scmp.ne.s32.totalorder %s69, %s70
      %p82 = scmp.eq.s32.totalorder %s18, 1
      %p83 = por %p81, %p82
      %p85 = scmp.ne.s32.totalorder %s70, %s84
      %p86 = scmp.eq.s32.totalorder %s18, 0
      %p87 = por %p85, %p86
      %s88 = ssub.s32 %s12, %s19
      %p89 = scmp.eq.s32.totalorder %s88, 0
      %s91 = sadd.s32 %s90, 1
      %s92 = scalar_select %p89, %s90, %s91
      %p95 = pneg %p89
      %p96 = scmp.eq.s32.totalorder %s12, 1
      %p97 = por %p95, %p96
      %p98 = scmp.ne.s32.totalorder %s90, %s93
      %p99 = scmp.eq.s32.totalorder %s12, 0
      %p100 = por %p98, %p99
      %p101 = scmp.ne.s32.totalorder %s90, %s93
      %p102 = scmp.eq.s32.totalorder %s17, 1
      %p103 = por %p101, %p102
      %p104 = scmp.ne.s32.totalorder %s93, %s94
      %p105 = scmp.eq.s32.totalorder %s17, 0
      %p106 = por %p104, %p105
      %p107 = scmp.ne.s32.totalorder %s93, %s94
      %p108 = scmp.eq.s32.totalorder %s18, 1
      %p109 = por %p107, %p108
      %p111 = scmp.ne.s32.totalorder %s94, %s110
      %p112 = scmp.eq.s32.totalorder %s18, 0
      %p113 = por %p111, %p112
      %p114 = scmp.le.s32.totalorder 1, %s12
      %p115 = scmp.lt.s32.totalorder %s12, 3
      %p116 = pnand %p114, %p115
      %p117 = pneg %p116
      // Predicated region
      $region9: #{tpu_custom_call.1} parent=5 // pred_check
        _
      $region10: #{tpu_custom_call.1} parent=5 // pred_check_branch
        %119 = sbr.rel (%p116) target = $region12
      $region11: #{tpu_custom_call.1} parent=5 // pred_region
        %s120 = ssub.s32 %s12, 1
        // Predicated region
        $region13: #{tpu_custom_call.1} parent=11 // pred_check
          %p121 = pneg %p59
        $region14: #{tpu_custom_call.1} parent=11 // pred_check_branch
          %123 = sbr.rel (%p121) target = $region16
        $region15: #{tpu_custom_call.1} parent=11 // pred_region
          _
        $region16: #{tpu_custom_call.1} parent=11 // pred_fallthru
          _
        // Predicated region
        $region17: #{tpu_custom_call.1} parent=11 // pred_check
          %p124 = pneg %p80
        $region18: #{tpu_custom_call.1} parent=11 // pred_check_branch
          %126 = sbr.rel (%p124) target = $region20
        $region19: #{tpu_custom_call.1} parent=11 // pred_region
          _
        $region20: #{tpu_custom_call.1} parent=11 // pred_fallthru
          _
      $region12: #{tpu_custom_call.1} parent=5 // pred_fallthru
        _
      %p127 = scmp.lt.s32.totalorder %s12, 2
      // Predicated region
      $region21: #{tpu_custom_call.1} parent=5 // pred_check
        %p128 = pneg %p127
      $region22: #{tpu_custom_call.1} parent=5 // pred_check_branch
        %130 = sbr.rel (%p128) target = $region24
      $region23: #{tpu_custom_call.1} parent=5 // pred_region
        // Predicated region
        $region25: #{tpu_custom_call.1} parent=23 // pred_check
          %p131 = pneg %p32
        $region26: #{tpu_custom_call.1} parent=23 // pred_check_branch
          %133 = sbr.rel (%p131) target = $region28
        $region27: #{tpu_custom_call.1} parent=23 // pred_region
          %p134 = scmp.lt.s32.totalorder %s12, 1
          %s135 = scalar_select %p134, %s12, 1
          %s136 = smul.addr %s135, 4
          %s137 = smul.addr %s136, 2
          %s138 = scalar_lea.vmem %s0, %s137
        $region28: #{tpu_custom_call.1} parent=23 // pred_fallthru
          _
      $region24: #{tpu_custom_call.1} parent=5 // pred_fallthru
        _
      %p139 = scmp.le.s32.totalorder 1, %s12
      %p140 = scmp.lt.s32.totalorder %s12, 3
      %p141 = pnand %p139, %p140
      %p142 = pneg %p141
      // Predicated region
      $region29: #{tpu_custom_call.1} parent=5 // pred_check
        _
      $region30: #{tpu_custom_call.1} parent=5 // pred_check_branch
        %144 = sbr.rel (%p141) target = $region32
      $region31: #{tpu_custom_call.1} parent=5 // pred_region
        %s145 = ssub.s32 %s12, 1
        %p146 = scmp.lt.s32.totalorder %s17, 1
        %s147 = scalar_select %p146, %s17, 1
        %s148 = smul.addr %s147, 4
        %s149 = smul.addr %s148, 2
        %s150 = scalar_lea.vmem %s0, %s149
        %p151 = pneg %p38
        %p152 = pneg %p35
        %p153 = pneg %p59
        %p154 = pneg %p56
        %p155 = pneg %p80
        %p156 = pneg %p77
        %p157 = pneg %p106
        %p158 = pneg %p103
        %s159 = sand.u32 %s93, 1
        %s160 = scalar_lea.sflag [#allocation3], %s159
        %s161 = sand.u32 %s93, 1
        %s162 = smul.addr %s161, 32
        %s163 = scalar_lea.vmem [#allocation2], %s162
        %p164 = scmp.lt.s32.totalorder %s17, 1
        %s165 = scalar_select %p164, %s17, 1
        %s166 = smul.addr %s165, 4
        %s167 = smul.addr %s166, 2
        %s168 = scalar_lea.vmem %s0, %s167
        %v170 = vld [vmem:[%s1] sm:$0xf]
        %v171 = vld [vmem:[%s168] sm:$0xff]
        %s172 = scalar_lea.vmem %s1, 4
        %v173 = vld [vmem:[%s172] sm:$0xf]
        %v175 = vcombine.high %v171, %v171
        %v177 = vunpack.c.l.s4 1983009808
        %v178 = vunpack.c.0.s8 %v177
        %v179 = vlaneseq
        %v180 = vshrl.u32 %v179, 7
        %v181 = vsub.s32 %v178, %v180
        %v182 = vrot.slane %v171, %v181
        %v184 = vunpack.c.l.s4 1983009808
        %v185 = vunpack.c.0.s8 %v184
        %v186 = vlaneseq
        %v187 = vshrl.u32 %v186, 7
        %v188 = vsub.s32 %v185, %v187
        %v189 = vrot.slane %v175, %v188
        %v190 = vcombine.high %v182, %v182
        %v191 = vcombine.high %v189, %v189
        %192 = vrot.lane.b32.xlu0 %v182, 127
        %v193 = vpop.permute.xlu0 %192
        %194 = vrot.lane.b32.xlu0 %v190, 127
        %v195 = vpop.permute.xlu0 %194
        %196 = vrot.lane.b32.xlu0 %v189, 127
        %v197 = vpop.permute.xlu0 %196
        %198 = vrot.lane.b32.xlu0 %v191, 127
        %v199 = vpop.permute.xlu0 %198
        %vm200 = vcmask 1039360
        %v201 = vsel %vm200, %v193, %v195
        %v202 = vsel %vm200, %v195, %v197
        %v203 = vsel %vm200, %v197, %v199
        %vm204 = vcmask 31744
        %v206 = vsel %vm204, %v173, 0
        %vm208 = vcmask 1041408
        %v210 = vsel %vm208, %v201, 0
        %v213 = vsel %vm208, %v202, 0
        %v216 = vsel %vm208, %v203, 0
        %v219 = vsel %vm208, %v199, 0
        %221 = vmatprep.subr.bf16.mxu0 %v213
        %222 = vmatpush1.bf16.msra.mxu0 %v210
        %223 = vmatprep.subr.bf16.mxu0 0
        %224 = vmatpush1.bf16.msra.mxu0 0
        %225 = vmatprep.subr.bf16.mxu0 0
        %226 = vmatpush1.bf16.msra.mxu0 0
        %227 = vmatprep.subr.bf16.mxu0 0
        %228 = vmatpush1.bf16.msra.mxu0 0
        %229 = vmatprep.subr.bf16.mxu0 0
        %230 = vmatpush1.bf16.msra.mxu0 0
        %231 = vmatprep.subr.bf16.mxu0 0
        %232 = vmatpush1.bf16.msra.mxu0 0
        %233 = vmatprep.subr.bf16.mxu0 0
        %234 = vmatpush1.bf16.msra.mxu0 0
        %235 = vmatprep.subr.bf16.mxu0 0
        %236 = vmatpush1.bf16.msra.mxu0 0
        %237 = vmatprep.subr.bf16.mxu0 0
        %238 = vmatpush1.bf16.msra.mxu0 0
        %239 = vmatprep.subr.bf16.mxu0 0
        %240 = vmatpush1.bf16.msra.mxu0 0
        %241 = vmatprep.subr.bf16.mxu0 0
        %242 = vmatpush1.bf16.msra.mxu0 0
        %243 = vmatprep.subr.bf16.mxu0 0
        %244 = vmatpush1.bf16.msra.mxu0 0
        %245 = vmatprep.subr.bf16.mxu0 0
        %246 = vmatpush1.bf16.msra.mxu0 0
        %247 = vmatprep.subr.bf16.mxu0 0
        %248 = vmatpush1.bf16.msra.mxu0 0
        %249 = vmatprep.subr.bf16.mxu0 0
        %250 = vmatpush1.bf16.msra.mxu0 0
        %251 = vmatprep.subr.bf16.mxu0 0
        %252 = vmatpush1.bf16.msra.mxu0 0
        %253 = vmatprep.mubr.bf16.mxu0 0
        %254 = vmatmul.mubr.bf16.gmra.mrb[0].mxu0 %v206
        %v255 = vpop.f32.mrb[0].mxu0
        %v256 = vadd.f32 0.0, %v255
        %v257 = vpop.f32.mrb[0].mxu0
        %v258 = vadd.f32 0.0, %v257
        %v259 = vpop.f32.mrb[0].mxu0
        %v260 = vpop.f32.mrb[0].mxu0
        %261 = vdwg.mxu0
        %262 = vmatprep.subr.bf16.mxu0 %v219
        %263 = vmatpush1.bf16.msra.mxu0 %v216
        %264 = vmatprep.subr.bf16.mxu0 0
        %265 = vmatpush1.bf16.msra.mxu0 0
        %266 = vmatprep.subr.bf16.mxu0 0
        %267 = vmatpush1.bf16.msra.mxu0 0
        %268 = vmatprep.subr.bf16.mxu0 0
        %269 = vmatpush1.bf16.msra.mxu0 0
        %270 = vmatprep.subr.bf16.mxu0 0
        %271 = vmatpush1.bf16.msra.mxu0 0
        %272 = vmatprep.subr.bf16.mxu0 0
        %273 = vmatpush1.bf16.msra.mxu0 0
        %274 = vmatprep.subr.bf16.mxu0 0
        %275 = vmatpush1.bf16.msra.mxu0 0
        %276 = vmatprep.subr.bf16.mxu0 0
        %277 = vmatpush1.bf16.msra.mxu0 0
        %278 = vmatprep.subr.bf16.mxu0 0
        %279 = vmatpush1.bf16.msra.mxu0 0
        %280 = vmatprep.subr.bf16.mxu0 0
        %281 = vmatpush1.bf16.msra.mxu0 0
        %282 = vmatprep.subr.bf16.mxu0 0
        %283 = vmatpush1.bf16.msra.mxu0 0
        %284 = vmatprep.subr.bf16.mxu0 0
        %285 = vmatpush1.bf16.msra.mxu0 0
        %286 = vmatprep.subr.bf16.mxu0 0
        %287 = vmatpush1.bf16.msra.mxu0 0
        %288 = vmatprep.subr.bf16.mxu0 0
        %289 = vmatpush1.bf16.msra.mxu0 0
        %290 = vmatprep.subr.bf16.mxu0 0
        %291 = vmatpush1.bf16.msra.mxu0 0
        %292 = vmatprep.subr.bf16.mxu0 0
        %293 = vmatpush1.bf16.msra.mxu0 0
        %294 = vmatprep.mubr.bf16.mxu0 0
        %295 = vmatmul.mubr.bf16.gmra.mrb[0].mxu0 %v206
        %v296 = vpop.f32.mrb[0].mxu0
        %v297 = vadd.f32 0.0, %v296
        %v298 = vpop.f32.mrb[0].mxu0
        %v299 = vadd.f32 0.0, %v298
        %v300 = vpop.f32.mrb[0].mxu0
        %v301 = vpop.f32.mrb[0].mxu0
        %302 = vdwg.mxu0
        %v304 = vsel %vm204, %v170, 0
        %v307 = vsel %vm208, %v182, 0
        %v310 = vsel %vm208, %v190, 0
        %v313 = vsel %vm208, %v189, 0
        %v316 = vsel %vm208, %v191, 0
        %318 = vmatprep.subr.bf16.mxu0 %v310
        %319 = vmatpush1.bf16.msra.mxu0 %v307
        %320 = vmatprep.subr.bf16.mxu0 0
        %321 = vmatpush1.bf16.msra.mxu0 0
        %322 = vmatprep.subr.bf16.mxu0 0
        %323 = vmatpush1.bf16.msra.mxu0 0
        %324 = vmatprep.subr.bf16.mxu0 0
        %325 = vmatpush1.bf16.msra.mxu0 0
        %326 = vmatprep.subr.bf16.mxu0 0
        %327 = vmatpush1.bf16.msra.mxu0 0
        %328 = vmatprep.subr.bf16.mxu0 0
        %329 = vmatpush1.bf16.msra.mxu0 0
        %330 = vmatprep.subr.bf16.mxu0 0
        %331 = vmatpush1.bf16.msra.mxu0 0
        %332 = vmatprep.subr.bf16.mxu0 0
        %333 = vmatpush1.bf16.msra.mxu0 0
        %334 = vmatprep.subr.bf16.mxu0 0
        %335 = vmatpush1.bf16.msra.mxu0 0
        %336 = vmatprep.subr.bf16.mxu0 0
        %337 = vmatpush1.bf16.msra.mxu0 0
        %338 = vmatprep.subr.bf16.mxu0 0
        %339 = vmatpush1.bf16.msra.mxu0 0
        %340 = vmatprep.subr.bf16.mxu0 0
        %341 = vmatpush1.bf16.msra.mxu0 0
        %342 = vmatprep.subr.bf16.mxu0 0
        %343 = vmatpush1.bf16.msra.mxu0 0
        %344 = vmatprep.subr.bf16.mxu0 0
        %345 = vmatpush1.bf16.msra.mxu0 0
        %346 = vmatprep.subr.bf16.mxu0 0
        %347 = vmatpush1.bf16.msra.mxu0 0
        %348 = vmatprep.subr.bf16.mxu0 0
        %349 = vmatpush1.bf16.msra.mxu0 0
        %350 = vmatprep.mubr.bf16.mxu0 0
        %351 = vmatmul.mubr.bf16.gmra.mrb[0].mxu0 %v304
        %v352 = vpop.f32.mrb[0].mxu0
        %v353 = vadd.f32 %v256, %v352
        %v354 = vpop.f32.mrb[0].mxu0
        %v355 = vadd.f32 %v258, %v354
        %v356 = vpop.f32.mrb[0].mxu0
        %v357 = vpop.f32.mrb[0].mxu0
        %358 = vdwg.mxu0
        %359 = vmatprep.subr.bf16.mxu0 %v316
        %360 = vmatpush1.bf16.msra.mxu0 %v313
        %361 = vmatprep.subr.bf16.mxu0 0
        %362 = vmatpush1.bf16.msra.mxu0 0
        %363 = vmatprep.subr.bf16.mxu0 0
        %364 = vmatpush1.bf16.msra.mxu0 0
        %365 = vmatprep.subr.bf16.mxu0 0
        %366 = vmatpush1.bf16.msra.mxu0 0
        %367 = vmatprep.subr.bf16.mxu0 0
        %368 = vmatpush1.bf16.msra.mxu0 0
        %369 = vmatprep.subr.bf16.mxu0 0
        %370 = vmatpush1.bf16.msra.mxu0 0
        %371 = vmatprep.subr.bf16.mxu0 0
        %372 = vmatpush1.bf16.msra.mxu0 0
        %373 = vmatprep.subr.bf16.mxu0 0
        %374 = vmatpush1.bf16.msra.mxu0 0
        %375 = vmatprep.subr.bf16.mxu0 0
        %376 = vmatpush1.bf16.msra.mxu0 0
        %377 = vmatprep.subr.bf16.mxu0 0
        %378 = vmatpush1.bf16.msra.mxu0 0
        %379 = vmatprep.subr.bf16.mxu0 0
        %380 = vmatpush1.bf16.msra.mxu0 0
        %381 = vmatprep.subr.bf16.mxu0 0
        %382 = vmatpush1.bf16.msra.mxu0 0
        %383 = vmatprep.subr.bf16.mxu0 0
        %384 = vmatpush1.bf16.msra.mxu0 0
        %385 = vmatprep.subr.bf16.mxu0 0
        %386 = vmatpush1.bf16.msra.mxu0 0
        %387 = vmatprep.subr.bf16.mxu0 0
        %388 = vmatpush1.bf16.msra.mxu0 0
        %389 = vmatprep.subr.bf16.mxu0 0
        %390 = vmatpush1.bf16.msra.mxu0 0
        %391 = vmatprep.mubr.bf16.mxu0 0
        %392 = vmatmul.mubr.bf16.gmra.mrb[0].mxu0 %v304
        %v393 = vpop.f32.mrb[0].mxu0
        %v394 = vadd.f32 %v297, %v393
        %v395 = vpop.f32.mrb[0].mxu0
        %v396 = vadd.f32 %v299, %v395
        %v397 = vpop.f32.mrb[0].mxu0
        %v398 = vpop.f32.mrb[0].mxu0
        %399 = vdwg.mxu0
        %s400 = scalar_lea.vmem %s1, 8
        %v401 = vld [vmem:[%s400] sm:$0xf]
        %v402 = vld [vmem:[%s168] sm:$0xff]
        %v404 = vcombine.high %v402, %v402
        %v406 = vunpack.c.l.s4 1983009808
        %v407 = vunpack.c.0.s8 %v406
        %v408 = vlaneseq
        %v409 = vshrl.u32 %v408, 7
        %v410 = vsub.s32 %v407, %v409
        %v411 = vrot.slane %v402, %v410
        %v413 = vunpack.c.l.s4 1983009808
        %v414 = vunpack.c.0.s8 %v413
        %v415 = vlaneseq
        %v416 = vshrl.u32 %v415, 7
        %v417 = vsub.s32 %v414, %v416
        %v418 = vrot.slane %v404, %v417
        %v419 = vcombine.high %v411, %v411
        %v420 = vcombine.high %v418, %v418
        %421 = vrot.lane.b32.xlu0 %v411, 126
        %v422 = vpop.permute.xlu0 %421
        %423 = vrot.lane.b32.xlu0 %v419, 126
        %v424 = vpop.permute.xlu0 %423
        %425 = vrot.lane.b32.xlu0 %v418, 126
        %v426 = vpop.permute.xlu0 %425
        %427 = vrot.lane.b32.xlu0 %v420, 126
        %v428 = vpop.permute.xlu0 %427
        %vm429 = vcmask 1031168
        %v430 = vsel %vm429, %v422, %v424
        %v431 = vsel %vm429, %v424, %v426
        %v432 = vsel %vm429, %v426, %v428
        %v434 = vsel %vm204, %v401, 0
        %v437 = vsel %vm208, %v430, 0
        %v440 = vsel %vm208, %v431, 0
        %v443 = vsel %vm208, %v432, 0
        %v446 = vsel %vm208, %v428, 0
        %448 = vmatprep.subr.bf16.mxu0 %v440
        %449 = vmatpush1.bf16.msra.mxu0 %v437
        %450 = vmatprep.subr.bf16.mxu0 0
        %451 = vmatpush1.bf16.msra.mxu0 0
        %452 = vmatprep.subr.bf16.mxu0 0
        %453 = vmatpush1.bf16.msra.mxu0 0
        %454 = vmatprep.subr.bf16.mxu0 0
        %455 = vmatpush1.bf16.msra.mxu0 0
        %456 = vmatprep.subr.bf16.mxu0 0
        %457 = vmatpush1.bf16.msra.mxu0 0
        %458 = vmatprep.subr.bf16.mxu0 0
        %459 = vmatpush1.bf16.msra.mxu0 0
        %460 = vmatprep.subr.bf16.mxu0 0
        %461 = vmatpush1.bf16.msra.mxu0 0
        %462 = vmatprep.subr.bf16.mxu0 0
        %463 = vmatpush1.bf16.msra.mxu0 0
        %464 = vmatprep.subr.bf16.mxu0 0
        %465 = vmatpush1.bf16.msra.mxu0 0
        %466 = vmatprep.subr.bf16.mxu0 0
        %467 = vmatpush1.bf16.msra.mxu0 0
        %468 = vmatprep.subr.bf16.mxu0 0
        %469 = vmatpush1.bf16.msra.mxu0 0
        %470 = vmatprep.subr.bf16.mxu0 0
        %471 = vmatpush1.bf16.msra.mxu0 0
        %472 = vmatprep.subr.bf16.mxu0 0
        %473 = vmatpush1.bf16.msra.mxu0 0
        %474 = vmatprep.subr.bf16.mxu0 0
        %475 = vmatpush1.bf16.msra.mxu0 0
        %476 = vmatprep.subr.bf16.mxu0 0
        %477 = vmatpush1.bf16.msra.mxu0 0
        %478 = vmatprep.subr.bf16.mxu0 0
        %479 = vmatpush1.bf16.msra.mxu0 0
        %480 = vmatprep.mubr.bf16.mxu0 0
        %481 = vmatmul.mubr.bf16.gmra.mrb[0].mxu0 %v434
        %v482 = vpop.f32.mrb[0].mxu0
        %v483 = vadd.f32 0.0, %v482
        %v484 = vpop.f32.mrb[0].mxu0
        %v485 = vadd.f32 0.0, %v484
        %v486 = vpop.f32.mrb[0].mxu0
        %v487 = vpop.f32.mrb[0].mxu0
        %488 = vdwg.mxu0
        %489 = vmatprep.subr.bf16.mxu0 %v446
        %490 = vmatpush1.bf16.msra.mxu0 %v443
        %491 = vmatprep.subr.bf16.mxu0 0
        %492 = vmatpush1.bf16.msra.mxu0 0
        %493 = vmatprep.subr.bf16.mxu0 0
        %494 = vmatpush1.bf16.msra.mxu0 0
        %495 = vmatprep.subr.bf16.mxu0 0
        %496 = vmatpush1.bf16.msra.mxu0 0
        %497 = vmatprep.subr.bf16.mxu0 0
        %498 = vmatpush1.bf16.msra.mxu0 0
        %499 = vmatprep.subr.bf16.mxu0 0
        %500 = vmatpush1.bf16.msra.mxu0 0
        %501 = vmatprep.subr.bf16.mxu0 0
        %502 = vmatpush1.bf16.msra.mxu0 0
        %503 = vmatprep.subr.bf16.mxu0 0
        %504 = vmatpush1.bf16.msra.mxu0 0
        %505 = vmatprep.subr.bf16.mxu0 0
        %506 = vmatpush1.bf16.msra.mxu0 0
        %507 = vmatprep.subr.bf16.mxu0 0
        %508 = vmatpush1.bf16.msra.mxu0 0
        %509 = vmatprep.subr.bf16.mxu0 0
        %510 = vmatpush1.bf16.msra.mxu0 0
        %511 = vmatprep.subr.bf16.mxu0 0
        %512 = vmatpush1.bf16.msra.mxu0 0
        %513 = vmatprep.subr.bf16.mxu0 0
        %514 = vmatpush1.bf16.msra.mxu0 0
        %515 = vmatprep.subr.bf16.mxu0 0
        %516 = vmatpush1.bf16.msra.mxu0 0
        %517 = vmatprep.subr.bf16.mxu0 0
        %518 = vmatpush1.bf16.msra.mxu0 0
        %519 = vmatprep.subr.bf16.mxu0 0
        %520 = vmatpush1.bf16.msra.mxu0 0
        %521 = vmatprep.mubr.bf16.mxu0 0
        %522 = vmatmul.mubr.bf16.gmra.mrb[0].mxu0 %v434
        %v523 = vpop.f32.mrb[0].mxu0
        %v524 = vadd.f32 0.0, %v523
        %v525 = vpop.f32.mrb[0].mxu0
        %v526 = vadd.f32 0.0, %v525
        %v527 = vpop.f32.mrb[0].mxu0
        %v528 = vpop.f32.mrb[0].mxu0
        %529 = vdwg.mxu0
        %v530 = vadd.f32 %v353, %v483
        %v531 = vadd.f32 %v355, %v485
        %v532 = vadd.f32 %v394, %v524
        %v533 = vadd.f32 %v396, %v526
        %s534 = scalar_lea.vmem %s1, 12
        %v535 = vld [vmem:[%s534] sm:$0xf]
        %v536 = vld [vmem:[%s168] sm:$0xff]
        %v538 = vcombine.high %v536, %v536
        %v540 = vunpack.c.l.s4 1983009808
        %v541 = vunpack.c.0.s8 %v540
        %v542 = vlaneseq
        %v543 = vshrl.u32 %v542, 7
        %v544 = vsub.s32 %v541, %v543
        %v545 = vrot.slane %v536, %v544
        %v547 = vunpack.c.l.s4 1983009808
        %v548 = vunpack.c.0.s8 %v547
        %v549 = vlaneseq
        %v550 = vshrl.u32 %v549, 7
        %v551 = vsub.s32 %v548, %v550
        %v552 = vrot.slane %v538, %v551
        %v553 = vcombine.high %v545, %v545
        %v554 = vcombine.high %v552, %v552
        %555 = vrot.lane.b32.xlu0 %v545, 125
        %v556 = vpop.permute.xlu0 %555
        %557 = vrot.lane.b32.xlu0 %v553, 125
        %v558 = vpop.permute.xlu0 %557
        %559 = vrot.lane.b32.xlu0 %v552, 125
        %v560 = vpop.permute.xlu0 %559
        %561 = vrot.lane.b32.xlu0 %v554, 125
        %v562 = vpop.permute.xlu0 %561
        %vm563 = vcmask 1022976
        %v564 = vsel %vm563, %v556, %v558
        %v565 = vsel %vm563, %v558, %v560
        %v566 = vsel %vm563, %v560, %v562
        %v568 = vsel %vm204, %v535, 0
        %v571 = vsel %vm208, %v564, 0
        %v574 = vsel %vm208, %v565, 0
        %v577 = vsel %vm208, %v566, 0
        %v580 = vsel %vm208, %v562, 0
        %582 = vmatprep.subr.bf16.mxu0 %v574
        %583 = vmatpush1.bf16.msra.mxu0 %v571
        %584 = vmatprep.subr.bf16.mxu0 0
        %585 = vmatpush1.bf16.msra.mxu0 0
        %586 = vmatprep.subr.bf16.mxu0 0
        %587 = vmatpush1.bf16.msra.mxu0 0
        %588 = vmatprep.subr.bf16.mxu0 0
        %589 = vmatpush1.bf16.msra.mxu0 0
        %590 = vmatprep.subr.bf16.mxu0 0
        %591 = vmatpush1.bf16.msra.mxu0 0
        %592 = vmatprep.subr.bf16.mxu0 0
        %593 = vmatpush1.bf16.msra.mxu0 0
        %594 = vmatprep.subr.bf16.mxu0 0
        %595 = vmatpush1.bf16.msra.mxu0 0
        %596 = vmatprep.subr.bf16.mxu0 0
        %597 = vmatpush1.bf16.msra.mxu0 0
        %598 = vmatprep.subr.bf16.mxu0 0
        %599 = vmatpush1.bf16.msra.mxu0 0
        %600 = vmatprep.subr.bf16.mxu0 0
        %601 = vmatpush1.bf16.msra.mxu0 0
        %602 = vmatprep.subr.bf16.mxu0 0
        %603 = vmatpush1.bf16.msra.mxu0 0
        %604 = vmatprep.subr.bf16.mxu0 0
        %605 = vmatpush1.bf16.msra.mxu0 0
        %606 = vmatprep.subr.bf16.mxu0 0
        %607 = vmatpush1.bf16.msra.mxu0 0
        %608 = vmatprep.subr.bf16.mxu0 0
        %609 = vmatpush1.bf16.msra.mxu0 0
        %610 = vmatprep.subr.bf16.mxu0 0
        %611 = vmatpush1.bf16.msra.mxu0 0
        %612 = vmatprep.subr.bf16.mxu0 0
        %613 = vmatpush1.bf16.msra.mxu0 0
        %614 = vmatprep.mubr.bf16.mxu0 0
        %615 = vmatmul.mubr.bf16.gmra.mrb[0].mxu0 %v568
        %v616 = vpop.f32.mrb[0].mxu0
        %v617 = vadd.f32 0.0, %v616
        %v618 = vpop.f32.mrb[0].mxu0
        %v619 = vadd.f32 0.0, %v618
        %v620 = vpop.f32.mrb[0].mxu0
        %v621 = vpop.f32.mrb[0].mxu0
        %622 = vdwg.mxu0
        %623 = vmatprep.subr.bf16.mxu0 %v580
        %624 = vmatpush1.bf16.msra.mxu0 %v577
        %625 = vmatprep.subr.bf16.mxu0 0
        %626 = vmatpush1.bf16.msra.mxu0 0
        %627 = vmatprep.subr.bf16.mxu0 0
        %628 = vmatpush1.bf16.msra.mxu0 0
        %629 = vmatprep.subr.bf16.mxu0 0
        %630 = vmatpush1.bf16.msra.mxu0 0
        %631 = vmatprep.subr.bf16.mxu0 0
        %632 = vmatpush1.bf16.msra.mxu0 0
        %633 = vmatprep.subr.bf16.mxu0 0
        %634 = vmatpush1.bf16.msra.mxu0 0
        %635 = vmatprep.subr.bf16.mxu0 0
        %636 = vmatpush1.bf16.msra.mxu0 0
        %637 = vmatprep.subr.bf16.mxu0 0
        %638 = vmatpush1.bf16.msra.mxu0 0
        %639 = vmatprep.subr.bf16.mxu0 0
        %640 = vmatpush1.bf16.msra.mxu0 0
        %641 = vmatprep.subr.bf16.mxu0 0
        %642 = vmatpush1.bf16.msra.mxu0 0
        %643 = vmatprep.subr.bf16.mxu0 0
        %644 = vmatpush1.bf16.msra.mxu0 0
        %645 = vmatprep.subr.bf16.mxu0 0
        %646 = vmatpush1.bf16.msra.mxu0 0
        %647 = vmatprep.subr.bf16.mxu0 0
        %648 = vmatpush1.bf16.msra.mxu0 0
        %649 = vmatprep.subr.bf16.mxu0 0
        %650 = vmatpush1.bf16.msra.mxu0 0
        %651 = vmatprep.subr.bf16.mxu0 0
        %652 = vmatpush1.bf16.msra.mxu0 0
        %653 = vmatprep.subr.bf16.mxu0 0
        %654 = vmatpush1.bf16.msra.mxu0 0
        %655 = vmatprep.mubr.bf16.mxu0 0
        %656 = vmatmul.mubr.bf16.gmra.mrb[0].mxu0 %v568
        %v657 = vpop.f32.mrb[0].mxu0
        %v658 = vadd.f32 0.0, %v657
        %v659 = vpop.f32.mrb[0].mxu0
        %v660 = vadd.f32 0.0, %v659
        %v661 = vpop.f32.mrb[0].mxu0
        %v662 = vpop.f32.mrb[0].mxu0
        %663 = vdwg.mxu0
        %v664 = vadd.f32 %v530, %v617
        %v665 = vadd.f32 %v531, %v619
        %v666 = vadd.f32 %v532, %v658
        %v667 = vadd.f32 %v533, %v660
        %s668 = scalar_lea.vmem %s1, 16
        %v669 = vld [vmem:[%s668] sm:$0xf]
        %v670 = vld [vmem:[%s168] sm:$0xff]
        %v672 = vcombine.high %v670, %v670
        %v674 = vunpack.c.l.s4 1983009808
        %v675 = vunpack.c.0.s8 %v674
        %v676 = vlaneseq
        %v677 = vshrl.u32 %v676, 7
        %v678 = vsub.s32 %v675, %v677
        %v679 = vrot.slane %v670, %v678
        %v681 = vunpack.c.l.s4 1983009808
        %v682 = vunpack.c.0.s8 %v681
        %v683 = vlaneseq
        %v684 = vshrl.u32 %v683, 7
        %v685 = vsub.s32 %v682, %v684
        %v686 = vrot.slane %v672, %v685
        %v687 = vcombine.high %v679, %v679
        %v688 = vcombine.high %v686, %v686
        %689 = vrot.lane.b32.xlu0 %v679, 106
        %v690 = vpop.permute.xlu0 %689
        %691 = vrot.lane.b32.xlu0 %v687, 106
        %v692 = vpop.permute.xlu0 %691
        %693 = vrot.lane.b32.xlu0 %v686, 106
        %v694 = vpop.permute.xlu0 %693
        %695 = vrot.lane.b32.xlu0 %v688, 106
        %v696 = vpop.permute.xlu0 %695
        %vm697 = vcmask 867328
        %v698 = vsel %vm697, %v690, %v692
        %v699 = vsel %vm697, %v692, %v694
        %v700 = vsel %vm697, %v694, %v696
        %v702 = vsel %vm204, %v669, 0
        %v705 = vsel %vm208, %v698, 0
        %v708 = vsel %vm208, %v699, 0
        %v711 = vsel %vm208, %v700, 0
        %v714 = vsel %vm208, %v696, 0
        %716 = vmatprep.subr.bf16.mxu0 %v708
        %717 = vmatpush1.bf16.msra.mxu0 %v705
        %718 = vmatprep.subr.bf16.mxu0 0
        %719 = vmatpush1.bf16.msra.mxu0 0
        %720 = vmatprep.subr.bf16.mxu0 0
        %721 = vmatpush1.bf16.msra.mxu0 0
        %722 = vmatprep.subr.bf16.mxu0 0
        %723 = vmatpush1.bf16.msra.mxu0 0
        %724 = vmatprep.subr.bf16.mxu0 0
        %725 = vmatpush1.bf16.msra.mxu0 0
        %726 = vmatprep.subr.bf16.mxu0 0
        %727 = vmatpush1.bf16.msra.mxu0 0
        %728 = vmatprep.subr.bf16.mxu0 0
        %729 = vmatpush1.bf16.msra.mxu0 0
        %730 = vmatprep.subr.bf16.mxu0 0
        %731 = vmatpush1.bf16.msra.mxu0 0
        %732 = vmatprep.subr.bf16.mxu0 0
        %733 = vmatpush1.bf16.msra.mxu0 0
        %734 = vmatprep.subr.bf16.mxu0 0
        %735 = vmatpush1.bf16.msra.mxu0 0
        %736 = vmatprep.subr.bf16.mxu0 0
        %737 = vmatpush1.bf16.msra.mxu0 0
        %738 = vmatprep.subr.bf16.mxu0 0
        %739 = vmatpush1.bf16.msra.mxu0 0
        %740 = vmatprep.subr.bf16.mxu0 0
        %741 = vmatpush1.bf16.msra.mxu0 0
        %742 = vmatprep.subr.bf16.mxu0 0
        %743 = vmatpush1.bf16.msra.mxu0 0
        %744 = vmatprep.subr.bf16.mxu0 0
        %745 = vmatpush1.bf16.msra.mxu0 0
        %746 = vmatprep.subr.bf16.mxu0 0
        %747 = vmatpush1.bf16.msra.mxu0 0
        %748 = vmatprep.mubr.bf16.mxu0 0
        %749 = vmatmul.mubr.bf16.gmra.mrb[0].mxu0 %v702
        %v750 = vpop.f32.mrb[0].mxu0
        %v751 = vadd.f32 0.0, %v750
        %v752 = vpop.f32.mrb[0].mxu0
        %v753 = vadd.f32 0.0, %v752
        %v754 = vpop.f32.mrb[0].mxu0
        %v755 = vpop.f32.mrb[0].mxu0
        %756 = vdwg.mxu0
        %757 = vmatprep.subr.bf16.mxu0 %v714
        %758 = vmatpush1.bf16.msra.mxu0 %v711
        %759 = vmatprep.subr.bf16.mxu0 0
        %760 = vmatpush1.bf16.msra.mxu0 0
        %761 = vmatprep.subr.bf16.mxu0 0
        %762 = vmatpush1.bf16.msra.mxu0 0
        %763 = vmatprep.subr.bf16.mxu0 0
        %764 = vmatpush1.bf16.msra.mxu0 0
        %765 = vmatprep.subr.bf16.mxu0 0
        %766 = vmatpush1.bf16.msra.mxu0 0
        %767 = vmatprep.subr.bf16.mxu0 0
        %768 = vmatpush1.bf16.msra.mxu0 0
        %769 = vmatprep.subr.bf16.mxu0 0
        %770 = vmatpush1.bf16.msra.mxu0 0
        %771 = vmatprep.subr.bf16.mxu0 0
        %772 = vmatpush1.bf16.msra.mxu0 0
        %773 = vmatprep.subr.bf16.mxu0 0
        %774 = vmatpush1.bf16.msra.mxu0 0
        %775 = vmatprep.subr.bf16.mxu0 0
        %776 = vmatpush1.bf16.msra.mxu0 0
        %777 = vmatprep.subr.bf16.mxu0 0
        %778 = vmatpush1.bf16.msra.mxu0 0
        %779 = vmatprep.subr.bf16.mxu0 0
        %780 = vmatpush1.bf16.msra.mxu0 0
        %781 = vmatprep.subr.bf16.mxu0 0
        %782 = vmatpush1.bf16.msra.mxu0 0
        %783 = vmatprep.subr.bf16.mxu0 0
        %784 = vmatpush1.bf16.msra.mxu0 0
        %785 = vmatprep.subr.bf16.mxu0 0
        %786 = vmatpush1.bf16.msra.mxu0 0
        %787 = vmatprep.subr.bf16.mxu0 0
        %788 = vmatpush1.bf16.msra.mxu0 0
        %789 = vmatprep.mubr.bf16.mxu0 0
        %790 = vmatmul.mubr.bf16.gmra.mrb[0].mxu0 %v702
        %v791 = vpop.f32.mrb[0].mxu0
        %v792 = vadd.f32 0.0, %v791
        %v793 = vpop.f32.mrb[0].mxu0
        %v794 = vadd.f32 0.0, %v793
        %v795 = vpop.f32.mrb[0].mxu0
        %v796 = vpop.f32.mrb[0].mxu0
        %797 = vdwg.mxu0
        %v798 = vadd.f32 %v664, %v751
        %v799 = vadd.f32 %v665, %v753
        %v800 = vadd.f32 %v666, %v792
        %v801 = vadd.f32 %v667, %v794
        %s802 = scalar_lea.vmem %s1, 20
        %v803 = vld [vmem:[%s802] sm:$0xf]
        %v804 = vld [vmem:[%s168] sm:$0xff]
        %v806 = vcombine.high %v804, %v804
        %v808 = vunpack.c.l.s4 1983009808
        %v809 = vunpack.c.0.s8 %v808
        %v810 = vlaneseq
        %v811 = vshrl.u32 %v810, 7
        %v812 = vsub.s32 %v809, %v811
        %v813 = vrot.slane %v804, %v812
        %v815 = vunpack.c.l.s4 1983009808
        %v816 = vunpack.c.0.s8 %v815
        %v817 = vlaneseq
        %v818 = vshrl.u32 %v817, 7
        %v819 = vsub.s32 %v816, %v818
        %v820 = vrot.slane %v806, %v819
        %v821 = vcombine.high %v813, %v813
        %v822 = vcombine.high %v820, %v820
        %823 = vrot.lane.b32.xlu0 %v813, 105
        %v824 = vpop.permute.xlu0 %823
        %825 = vrot.lane.b32.xlu0 %v821, 105
        %v826 = vpop.permute.xlu0 %825
        %827 = vrot.lane.b32.xlu0 %v820, 105
        %v828 = vpop.permute.xlu0 %827
        %829 = vrot.lane.b32.xlu0 %v822, 105
        %v830 = vpop.permute.xlu0 %829
        %vm831 = vcmask 859136
        %v832 = vsel %vm831, %v824, %v826
        %v833 = vsel %vm831, %v826, %v828
        %v834 = vsel %vm831, %v828, %v830
        %v836 = vsel %vm204, %v803, 0
        %v839 = vsel %vm208, %v832, 0
        %v842 = vsel %vm208, %v833, 0
        %v845 = vsel %vm208, %v834, 0
        %v848 = vsel %vm208, %v830, 0
        %850 = vmatprep.subr.bf16.mxu0 %v842
        %851 = vmatpush1.bf16.msra.mxu0 %v839
        %852 = vmatprep.subr.bf16.mxu0 0
        %853 = vmatpush1.bf16.msra.mxu0 0
        %854 = vmatprep.subr.bf16.mxu0 0
        %855 = vmatpush1.bf16.msra.mxu0 0
        %856 = vmatprep.subr.bf16.mxu0 0
        %857 = vmatpush1.bf16.msra.mxu0 0
        %858 = vmatprep.subr.bf16.mxu0 0
        %859 = vmatpush1.bf16.msra.mxu0 0
        %860 = vmatprep.subr.bf16.mxu0 0
        %861 = vmatpush1.bf16.msra.mxu0 0
        %862 = vmatprep.subr.bf16.mxu0 0
        %863 = vmatpush1.bf16.msra.mxu0 0
        %864 = vmatprep.subr.bf16.mxu0 0
        %865 = vmatpush1.bf16.msra.mxu0 0
        %866 = vmatprep.subr.bf16.mxu0 0
        %867 = vmatpush1.bf16.msra.mxu0 0
        %868 = vmatprep.subr.bf16.mxu0 0
        %869 = vmatpush1.bf16.msra.mxu0 0
        %870 = vmatprep.subr.bf16.mxu0 0
        %871 = vmatpush1.bf16.msra.mxu0 0
        %872 = vmatprep.subr.bf16.mxu0 0
        %873 = vmatpush1.bf16.msra.mxu0 0
        %874 = vmatprep.subr.bf16.mxu0 0
        %875 = vmatpush1.bf16.msra.mxu0 0
        %876 = vmatprep.subr.bf16.mxu0 0
        %877 = vmatpush1.bf16.msra.mxu0 0
        %878 = vmatprep.subr.bf16.mxu0 0
        %879 = vmatpush1.bf16.msra.mxu0 0
        %880 = vmatprep.subr.bf16.mxu0 0
        %881 = vmatpush1.bf16.msra.mxu0 0
        %882 = vmatprep.mubr.bf16.mxu0 0
        %883 = vmatmul.mubr.bf16.gmra.mrb[0].mxu0 %v836
        %v884 = vpop.f32.mrb[0].mxu0
        %v885 = vadd.f32 0.0, %v884
        %v886 = vpop.f32.mrb[0].mxu0
        %v887 = vadd.f32 0.0, %v886
        %v888 = vpop.f32.mrb[0].mxu0
        %v889 = vpop.f32.mrb[0].mxu0
        %890 = vdwg.mxu0
        %891 = vmatprep.subr.bf16.mxu0 %v848
        %892 = vmatpush1.bf16.msra.mxu0 %v845
        %893 = vmatprep.subr.bf16.mxu0 0
        %894 = vmatpush1.bf16.msra.mxu0 0
        %895 = vmatprep.subr.bf16.mxu0 0
        %896 = vmatpush1.bf16.msra.mxu0 0
        %897 = vmatprep.subr.bf16.mxu0 0
        %898 = vmatpush1.bf16.msra.mxu0 0
        %899 = vmatprep.subr.bf16.mxu0 0
        %900 = vmatpush1.bf16.msra.mxu0 0
        %901 = vmatprep.subr.bf16.mxu0 0
        %902 = vmatpush1.bf16.msra.mxu0 0
        %903 = vmatprep.subr.bf16.mxu0 0
        %904 = vmatpush1.bf16.msra.mxu0 0
        %905 = vmatprep.subr.bf16.mxu0 0
        %906 = vmatpush1.bf16.msra.mxu0 0
        %907 = vmatprep.subr.bf16.mxu0 0
        %908 = vmatpush1.bf16.msra.mxu0 0
        %909 = vmatprep.subr.bf16.mxu0 0
        %910 = vmatpush1.bf16.msra.mxu0 0
        %911 = vmatprep.subr.bf16.mxu0 0
        %912 = vmatpush1.bf16.msra.mxu0 0
        %913 = vmatprep.subr.bf16.mxu0 0
        %914 = vmatpush1.bf16.msra.mxu0 0
        %915 = vmatprep.subr.bf16.mxu0 0
        %916 = vmatpush1.bf16.msra.mxu0 0
        %917 = vmatprep.subr.bf16.mxu0 0
        %918 = vmatpush1.bf16.msra.mxu0 0
        %919 = vmatprep.subr.bf16.mxu0 0
        %920 = vmatpush1.bf16.msra.mxu0 0
        %921 = vmatprep.subr.bf16.mxu0 0
        %922 = vmatpush1.bf16.msra.mxu0 0
        %923 = vmatprep.mubr.bf16.mxu0 0
        %924 = vmatmul.mubr.bf16.gmra.mrb[0].mxu0 %v836
        %v925 = vpop.f32.mrb[0].mxu0
        %v926 = vadd.f32 0.0, %v925
        %v927 = vpop.f32.mrb[0].mxu0
        %v928 = vadd.f32 0.0, %v927
        %v929 = vpop.f32.mrb[0].mxu0
        %v930 = vpop.f32.mrb[0].mxu0
        %931 = vdwg.mxu0
        %v932 = vadd.f32 %v798, %v885
        %v933 = vadd.f32 %v799, %v887
        %v934 = vadd.f32 %v800, %v926
        %v935 = vadd.f32 %v801, %v928
        %s936 = scalar_lea.vmem %s1, 24
        %v937 = vld [vmem:[%s936] sm:$0xf]
        %v938 = vld [vmem:[%s168] sm:$0xff]
        %v940 = vcombine.high %v938, %v938
        %v942 = vunpack.c.l.s4 1983009808
        %v943 = vunpack.c.0.s8 %v942
        %v944 = vlaneseq
        %v945 = vshrl.u32 %v944, 7
        %v946 = vsub.s32 %v943, %v945
        %v947 = vrot.slane %v938, %v946
        %v949 = vunpack.c.l.s4 1983009808
        %v950 = vunpack.c.0.s8 %v949
        %v951 = vlaneseq
        %v952 = vshrl.u32 %v951, 7
        %v953 = vsub.s32 %v950, %v952
        %v954 = vrot.slane %v940, %v953
        %v955 = vcombine.high %v947, %v947
        %v956 = vcombine.high %v954, %v954
        %957 = vrot.lane.b32.xlu0 %v947, 104
        %v958 = vpop.permute.xlu0 %957
        %959 = vrot.lane.b32.xlu0 %v955, 104
        %v960 = vpop.permute.xlu0 %959
        %961 = vrot.lane.b32.xlu0 %v954, 104
        %v962 = vpop.permute.xlu0 %961
        %963 = vrot.lane.b32.xlu0 %v956, 104
        %v964 = vpop.permute.xlu0 %963
        %vm965 = vcmask 850944
        %v966 = vsel %vm965, %v958, %v960
        %v967 = vsel %vm965, %v960, %v962
        %v968 = vsel %vm965, %v962, %v964
        %v970 = vsel %vm204, %v937, 0
        %v973 = vsel %vm208, %v966, 0
        %v976 = vsel %vm208, %v967, 0
        %v979 = vsel %vm208, %v968, 0
        %v982 = vsel %vm208, %v964, 0
        %984 = vmatprep.subr.bf16.mxu0 %v976
        %985 = vmatpush1.bf16.msra.mxu0 %v973
        %986 = vmatprep.subr.bf16.mxu0 0
        %987 = vmatpush1.bf16.msra.mxu0 0
        %988 = vmatprep.subr.bf16.mxu0 0
        %989 = vmatpush1.bf16.msra.mxu0 0
        %990 = vmatprep.subr.bf16.mxu0 0
        %991 = vmatpush1.bf16.msra.mxu0 0
        %992 = vmatprep.subr.bf16.mxu0 0
        %993 = vmatpush1.bf16.msra.mxu0 0
        %994 = vmatprep.subr.bf16.mxu0 0
        %995 = vmatpush1.bf16.msra.mxu0 0
        %996 = vmatprep.subr.bf16.mxu0 0
        %997 = vmatpush1.bf16.msra.mxu0 0
        %998 = vmatprep.subr.bf16.mxu0 0
        %999 = vmatpush1.bf16.msra.mxu0 0
        %1000 = vmatprep.subr.bf16.mxu0 0
        %1001 = vmatpush1.bf16.msra.mxu0 0
        %1002 = vmatprep.subr.bf16.mxu0 0
        %1003 = vmatpush1.bf16.msra.mxu0 0
        %1004 = vmatprep.subr.bf16.mxu0 0
        %1005 = vmatpush1.bf16.msra.mxu0 0
        %1006 = vmatprep.subr.bf16.mxu0 0
        %1007 = vmatpush1.bf16.msra.mxu0 0
        %1008 = vmatprep.subr.bf16.mxu0 0
        %1009 = vmatpush1.bf16.msra.mxu0 0
        %1010 = vmatprep.subr.bf16.mxu0 0
        %1011 = vmatpush1.bf16.msra.mxu0 0
        %1012 = vmatprep.subr.bf16.mxu0 0
        %1013 = vmatpush1.bf16.msra.mxu0 0
        %1014 = vmatprep.subr.bf16.mxu0 0
        %1015 = vmatpush1.bf16.msra.mxu0 0
        %1016 = vmatprep.mubr.bf16.mxu0 0
        %1017 = vmatmul.mubr.bf16.gmra.mrb[0].mxu0 %v970
        %v1018 = vpop.f32.mrb[0].mxu0
        %v1019 = vadd.f32 0.0, %v1018
        %v1020 = vpop.f32.mrb[0].mxu0
        %v1021 = vadd.f32 0.0, %v1020
        %v1022 = vpop.f32.mrb[0].mxu0
        %v1023 = vpop.f32.mrb[0].mxu0
        %1024 = vdwg.mxu0
        %1025 = vmatprep.subr.bf16.mxu0 %v982
        %1026 = vmatpush1.bf16.msra.mxu0 %v979
        %1027 = vmatprep.subr.bf16.mxu0 0
        %1028 = vmatpush1.bf16.msra.mxu0 0
        %1029 = vmatprep.subr.bf16.mxu0 0
        %1030 = vmatpush1.bf16.msra.mxu0 0
        %1031 = vmatprep.subr.bf16.mxu0 0
        %1032 = vmatpush1.bf16.msra.mxu0 0
        %1033 = vmatprep.subr.bf16.mxu0 0
        %1034 = vmatpush1.bf16.msra.mxu0 0
        %1035 = vmatprep.subr.bf16.mxu0 0
        %1036 = vmatpush1.bf16.msra.mxu0 0
        %1037 = vmatprep.subr.bf16.mxu0 0
        %1038 = vmatpush1.bf16.msra.mxu0 0
        %1039 = vmatprep.subr.bf16.mxu0 0
        %1040 = vmatpush1.bf16.msra.mxu0 0
        %1041 = vmatprep.subr.bf16.mxu0 0
        %1042 = vmatpush1.bf16.msra.mxu0 0
        %1043 = vmatprep.subr.bf16.mxu0 0
        %1044 = vmatpush1.bf16.msra.mxu0 0
        %1045 = vmatprep.subr.bf16.mxu0 0
        %1046 = vmatpush1.bf16.msra.mxu0 0
        %1047 = vmatprep.subr.bf16.mxu0 0
        %1048 = vmatpush1.bf16.msra.mxu0 0
        %1049 = vmatprep.subr.bf16.mxu0 0
        %1050 = vmatpush1.bf16.msra.mxu0 0
        %1051 = vmatprep.subr.bf16.mxu0 0
        %1052 = vmatpush1.bf16.msra.mxu0 0
        %1053 = vmatprep.subr.bf16.mxu0 0
        %1054 = vmatpush1.bf16.msra.mxu0 0
        %1055 = vmatprep.subr.bf16.mxu0 0
        %1056 = vmatpush1.bf16.msra.mxu0 0
        %1057 = vmatprep.mubr.bf16.mxu0 0
        %1058 = vmatmul.mubr.bf16.gmra.mrb[0].mxu0 %v970
        %v1059 = vpop.f32.mrb[0].mxu0
        %v1060 = vadd.f32 0.0, %v1059
        %v1061 = vpop.f32.mrb[0].mxu0
        %v1062 = vadd.f32 0.0, %v1061
        %v1063 = vpop.f32.mrb[0].mxu0
        %v1064 = vpop.f32.mrb[0].mxu0
        %1065 = vdwg.mxu0
        %v1066 = vadd.f32 %v932, %v1019
        %v1067 = vadd.f32 %v933, %v1021
        %v1068 = vadd.f32 %v934, %v1060
        %v1069 = vadd.f32 %v935, %v1062
        %s1070 = scalar_lea.vmem %s1, 28
        %v1071 = vld [vmem:[%s1070] sm:$0xf]
        %v1072 = vld [vmem:[%s168] sm:$0xff]
        %v1074 = vcombine.high %v1072, %v1072
        %v1076 = vunpack.c.l.s4 1983009808
        %v1077 = vunpack.c.0.s8 %v1076
        %v1078 = vlaneseq
        %v1079 = vshrl.u32 %v1078, 7
        %v1080 = vsub.s32 %v1077, %v1079
        %v1081 = vrot.slane %v1072, %v1080
        %v1083 = vunpack.c.l.s4 1983009808
        %v1084 = vunpack.c.0.s8 %v1083
        %v1085 = vlaneseq
        %v1086 = vshrl.u32 %v1085, 7
        %v1087 = vsub.s32 %v1084, %v1086
        %v1088 = vrot.slane %v1074, %v1087
        %v1089 = vcombine.high %v1081, %v1081
        %v1090 = vcombine.high %v1088, %v1088
        %1091 = vrot.lane.b32.xlu0 %v1081, 103
        %v1092 = vpop.permute.xlu0 %1091
        %1093 = vrot.lane.b32.xlu0 %v1089, 103
        %v1094 = vpop.permute.xlu0 %1093
        %1095 = vrot.lane.b32.xlu0 %v1088, 103
        %v1096 = vpop.permute.xlu0 %1095
        %1097 = vrot.lane.b32.xlu0 %v1090, 103
        %v1098 = vpop.permute.xlu0 %1097
        %vm1099 = vcmask 842752
        %v1100 = vsel %vm1099, %v1092, %v1094
        %v1101 = vsel %vm1099, %v1094, %v1096
        %v1102 = vsel %vm1099, %v1096, %v1098
        %v1104 = vsel %vm204, %v1071, 0
        %v1107 = vsel %vm208, %v1100, 0
        %v1110 = vsel %vm208, %v1101, 0
        %v1113 = vsel %vm208, %v1102, 0
        %v1116 = vsel %vm208, %v1098, 0
        %1118 = vmatprep.subr.bf16.mxu0 %v1110
        %1119 = vmatpush1.bf16.msra.mxu0 %v1107
        %1120 = vmatprep.subr.bf16.mxu0 0
        %1121 = vmatpush1.bf16.msra.mxu0 0
        %1122 = vmatprep.subr.bf16.mxu0 0
        %1123 = vmatpush1.bf16.msra.mxu0 0
        %1124 = vmatprep.subr.bf16.mxu0 0
        %1125 = vmatpush1.bf16.msra.mxu0 0
        %1126 = vmatprep.subr.bf16.mxu0 0
        %1127 = vmatpush1.bf16.msra.mxu0 0
        %1128 = vmatprep.subr.bf16.mxu0 0
        %1129 = vmatpush1.bf16.msra.mxu0 0
        %1130 = vmatprep.subr.bf16.mxu0 0
        %1131 = vmatpush1.bf16.msra.mxu0 0
        %1132 = vmatprep.subr.bf16.mxu0 0
        %1133 = vmatpush1.bf16.msra.mxu0 0
        %1134 = vmatprep.subr.bf16.mxu0 0
        %1135 = vmatpush1.bf16.msra.mxu0 0
        %1136 = vmatprep.subr.bf16.mxu0 0
        %1137 = vmatpush1.bf16.msra.mxu0 0
        %1138 = vmatprep.subr.bf16.mxu0 0
        %1139 = vmatpush1.bf16.msra.mxu0 0
        %1140 = vmatprep.subr.bf16.mxu0 0
        %1141 = vmatpush1.bf16.msra.mxu0 0
        %1142 = vmatprep.subr.bf16.mxu0 0
        %1143 = vmatpush1.bf16.msra.mxu0 0
        %1144 = vmatprep.subr.bf16.mxu0 0
        %1145 = vmatpush1.bf16.msra.mxu0 0
        %1146 = vmatprep.subr.bf16.mxu0 0
        %1147 = vmatpush1.bf16.msra.mxu0 0
        %1148 = vmatprep.subr.bf16.mxu0 0
        %1149 = vmatpush1.bf16.msra.mxu0 0
        %1150 = vmatprep.mubr.bf16.mxu0 0
        %1151 = vmatmul.mubr.bf16.gmra.mrb[0].mxu0 %v1104
        %v1152 = vpop.f32.mrb[0].mxu0
        %v1153 = vadd.f32 0.0, %v1152
        %v1154 = vpop.f32.mrb[0].mxu0
        %v1155 = vadd.f32 0.0, %v1154
        %v1156 = vpop.f32.mrb[0].mxu0
        %v1157 = vpop.f32.mrb[0].mxu0
        %1158 = vdwg.mxu0
        %1159 = vmatprep.subr.bf16.mxu0 %v1116
        %1160 = vmatpush1.bf16.msra.mxu0 %v1113
        %1161 = vmatprep.subr.bf16.mxu0 0
        %1162 = vmatpush1.bf16.msra.mxu0 0
        %1163 = vmatprep.subr.bf16.mxu0 0
        %1164 = vmatpush1.bf16.msra.mxu0 0
        %1165 = vmatprep.subr.bf16.mxu0 0
        %1166 = vmatpush1.bf16.msra.mxu0 0
        %1167 = vmatprep.subr.bf16.mxu0 0
        %1168 = vmatpush1.bf16.msra.mxu0 0
        %1169 = vmatprep.subr.bf16.mxu0 0
        %1170 = vmatpush1.bf16.msra.mxu0 0
        %1171 = vmatprep.subr.bf16.mxu0 0
        %1172 = vmatpush1.bf16.msra.mxu0 0
        %1173 = vmatprep.subr.bf16.mxu0 0
        %1174 = vmatpush1.bf16.msra.mxu0 0
        %1175 = vmatprep.subr.bf16.mxu0 0
        %1176 = vmatpush1.bf16.msra.mxu0 0
        %1177 = vmatprep.subr.bf16.mxu0 0
        %1178 = vmatpush1.bf16.msra.mxu0 0
        %1179 = vmatprep.subr.bf16.mxu0 0
        %1180 = vmatpush1.bf16.msra.mxu0 0
        %1181 = vmatprep.subr.bf16.mxu0 0
        %1182 = vmatpush1.bf16.msra.mxu0 0
        %1183 = vmatprep.subr.bf16.mxu0 0
        %1184 = vmatpush1.bf16.msra.mxu0 0
        %1185 = vmatprep.subr.bf16.mxu0 0
        %1186 = vmatpush1.bf16.msra.mxu0 0
        %1187 = vmatprep.subr.bf16.mxu0 0
        %1188 = vmatpush1.bf16.msra.mxu0 0
        %1189 = vmatprep.subr.bf16.mxu0 0
        %1190 = vmatpush1.bf16.msra.mxu0 0
        %1191 = vmatprep.mubr.bf16.mxu0 0
        %1192 = vmatmul.mubr.bf16.gmra.mrb[0].mxu0 %v1104
        %v1193 = vpop.f32.mrb[0].mxu0
        %v1194 = vadd.f32 0.0, %v1193
        %v1195 = vpop.f32.mrb[0].mxu0
        %v1196 = vadd.f32 0.0, %v1195
        %v1197 = vpop.f32.mrb[0].mxu0
        %v1198 = vpop.f32.mrb[0].mxu0
        %1199 = vdwg.mxu0
        %v1200 = vadd.f32 %v1066, %v1153
        %v1201 = vadd.f32 %v1067, %v1155
        %v1202 = vadd.f32 %v1068, %v1194
        %v1203 = vadd.f32 %v1069, %v1196
        %s1204 = scalar_lea.vmem %s1, 32
        %v1205 = vld [vmem:[%s1204] sm:$0xf]
        %v1206 = vld [vmem:[%s168] sm:$0xff]
        %v1208 = vcombine.high %v1206, %v1206
        %v1210 = vunpack.c.l.s4 1983009808
        %v1211 = vunpack.c.0.s8 %v1210
        %v1212 = vlaneseq
        %v1213 = vshrl.u32 %v1212, 7
        %v1214 = vsub.s32 %v1211, %v1213
        %v1215 = vrot.slane %v1206, %v1214
        %v1217 = vunpack.c.l.s4 1983009808
        %v1218 = vunpack.c.0.s8 %v1217
        %v1219 = vlaneseq
        %v1220 = vshrl.u32 %v1219, 7
        %v1221 = vsub.s32 %v1218, %v1220
        %v1222 = vrot.slane %v1208, %v1221
        %v1223 = vcombine.high %v1215, %v1215
        %v1224 = vcombine.high %v1222, %v1222
        %1225 = vrot.lane.b32.xlu0 %v1215, 84
        %v1226 = vpop.permute.xlu0 %1225
        %1227 = vrot.lane.b32.xlu0 %v1223, 84
        %v1228 = vpop.permute.xlu0 %1227
        %1229 = vrot.lane.b32.xlu0 %v1222, 84
        %v1230 = vpop.permute.xlu0 %1229
        %1231 = vrot.lane.b32.xlu0 %v1224, 84
        %v1232 = vpop.permute.xlu0 %1231
        %vm1233 = vcmask 687104
        %v1234 = vsel %vm1233, %v1226, %v1228
        %v1235 = vsel %vm1233, %v1228, %v1230
        %v1236 = vsel %vm1233, %v1230, %v1232
        %v1238 = vsel %vm204, %v1205, 0
        %v1241 = vsel %vm208, %v1234, 0
        %v1244 = vsel %vm208, %v1235, 0
        %v1247 = vsel %vm208, %v1236, 0
        %v1250 = vsel %vm208, %v1232, 0
        %1252 = vmatprep.subr.bf16.mxu0 %v1244
        %1253 = vmatpush1.bf16.msra.mxu0 %v1241
        %1254 = vmatprep.subr.bf16.mxu0 0
        %1255 = vmatpush1.bf16.msra.mxu0 0
        %1256 = vmatprep.subr.bf16.mxu0 0
        %1257 = vmatpush1.bf16.msra.mxu0 0
        %1258 = vmatprep.subr.bf16.mxu0 0
        %1259 = vmatpush1.bf16.msra.mxu0 0
        %1260 = vmatprep.subr.bf16.mxu0 0
        %1261 = vmatpush1.bf16.msra.mxu0 0
        %1262 = vmatprep.subr.bf16.mxu0 0
        %1263 = vmatpush1.bf16.msra.mxu0 0
        %1264 = vmatprep.subr.bf16.mxu0 0
        %1265 = vmatpush1.bf16.msra.mxu0 0
        %1266 = vmatprep.subr.bf16.mxu0 0
        %1267 = vmatpush1.bf16.msra.mxu0 0
        %1268 = vmatprep.subr.bf16.mxu0 0
        %1269 = vmatpush1.bf16.msra.mxu0 0
        %1270 = vmatprep.subr.bf16.mxu0 0
        %1271 = vmatpush1.bf16.msra.mxu0 0
        %1272 = vmatprep.subr.bf16.mxu0 0
        %1273 = vmatpush1.bf16.msra.mxu0 0
        %1274 = vmatprep.subr.bf16.mxu0 0
        %1275 = vmatpush1.bf16.msra.mxu0 0
        %1276 = vmatprep.subr.bf16.mxu0 0
        %1277 = vmatpush1.bf16.msra.mxu0 0
        %1278 = vmatprep.subr.bf16.mxu0 0
        %1279 = vmatpush1.bf16.msra.mxu0 0
        %1280 = vmatprep.subr.bf16.mxu0 0
        %1281 = vmatpush1.bf16.msra.mxu0 0
        %1282 = vmatprep.subr.bf16.mxu0 0
        %1283 = vmatpush1.bf16.msra.mxu0 0
        %1284 = vmatprep.mubr.bf16.mxu0 0
        %1285 = vmatmul.mubr.bf16.gmra.mrb[0].mxu0 %v1238
        %v1286 = vpop.f32.mrb[0].mxu0
        %v1287 = vadd.f32 0.0, %v1286
        %v1288 = vpop.f32.mrb[0].mxu0
        %v1289 = vadd.f32 0.0, %v1288
        %v1290 = vpop.f32.mrb[0].mxu0
        %v1291 = vpop.f32.mrb[0].mxu0
        %1292 = vdwg.mxu0
        %1293 = vmatprep.subr.bf16.mxu0 %v1250
        %1294 = vmatpush1.bf16.msra.mxu0 %v1247
        %1295 = vmatprep.subr.bf16.mxu0 0
        %1296 = vmatpush1.bf16.msra.mxu0 0
        %1297 = vmatprep.subr.bf16.mxu0 0
        %1298 = vmatpush1.bf16.msra.mxu0 0
        %1299 = vmatprep.subr.bf16.mxu0 0
        %1300 = vmatpush1.bf16.msra.mxu0 0
        %1301 = vmatprep.subr.bf16.mxu0 0
        %1302 = vmatpush1.bf16.msra.mxu0 0
        %1303 = vmatprep.subr.bf16.mxu0 0
        %1304 = vmatpush1.bf16.msra.mxu0 0
        %1305 = vmatprep.subr.bf16.mxu0 0
        %1306 = vmatpush1.bf16.msra.mxu0 0
        %1307 = vmatprep.subr.bf16.mxu0 0
        %1308 = vmatpush1.bf16.msra.mxu0 0
        %1309 = vmatprep.subr.bf16.mxu0 0
        %1310 = vmatpush1.bf16.msra.mxu0 0
        %1311 = vmatprep.subr.bf16.mxu0 0
        %1312 = vmatpush1.bf16.msra.mxu0 0
        %1313 = vmatprep.subr.bf16.mxu0 0
        %1314 = vmatpush1.bf16.msra.mxu0 0
        %1315 = vmatprep.subr.bf16.mxu0 0
        %1316 = vmatpush1.bf16.msra.mxu0 0
        %1317 = vmatprep.subr.bf16.mxu0 0
        %1318 = vmatpush1.bf16.msra.mxu0 0
        %1319 = vmatprep.subr.bf16.mxu0 0
        %1320 = vmatpush1.bf16.msra.mxu0 0
        %1321 = vmatprep.subr.bf16.mxu0 0
        %1322 = vmatpush1.bf16.msra.mxu0 0
        %1323 = vmatprep.subr.bf16.mxu0 0
        %1324 = vmatpush1.bf16.msra.mxu0 0
        %1325 = vmatprep.mubr.bf16.mxu0 0
        %1326 = vmatmul.mubr.bf16.gmra.mrb[0].mxu0 %v1238
        %v1327 = vpop.f32.mrb[0].mxu0
        %v1328 = vadd.f32 0.0, %v1327
        %v1329 = vpop.f32.mrb[0].mxu0
        %v1330 = vadd.f32 0.0, %v1329
        %v1331 = vpop.f32.mrb[0].mxu0
        %v1332 = vpop.f32.mrb[0].mxu0
        %1333 = vdwg.mxu0
        %v1334 = vadd.f32 %v1200, %v1287
        %v1335 = vadd.f32 %v1201, %v1289
        %v1336 = vadd.f32 %v1202, %v1328
        %v1337 = vadd.f32 %v1203, %v1330
        %s1338 = scalar_lea.vmem %s1, 36
        %v1339 = vld [vmem:[%s1338] sm:$0xf]
        %v1340 = vld [vmem:[%s168] sm:$0xff]
        %v1342 = vcombine.high %v1340, %v1340
        %v1344 = vunpack.c.l.s4 1983009808
        %v1345 = vunpack.c.0.s8 %v1344
        %v1346 = vlaneseq
        %v1347 = vshrl.u32 %v1346, 7
        %v1348 = vsub.s32 %v1345, %v1347
        %v1349 = vrot.slane %v1340, %v1348
        %v1351 = vunpack.c.l.s4 1983009808
        %v1352 = vunpack.c.0.s8 %v1351
        %v1353 = vlaneseq
        %v1354 = vshrl.u32 %v1353, 7
        %v1355 = vsub.s32 %v1352, %v1354
        %v1356 = vrot.slane %v1342, %v1355
        %v1357 = vcombine.high %v1349, %v1349
        %v1358 = vcombine.high %v1356, %v1356
        %1359 = vrot.lane.b32.xlu0 %v1349, 83
        %v1360 = vpop.permute.xlu0 %1359
        %1361 = vrot.lane.b32.xlu0 %v1357, 83
        %v1362 = vpop.permute.xlu0 %1361
        %1363 = vrot.lane.b32.xlu0 %v1356, 83
        %v1364 = vpop.permute.xlu0 %1363
        %1365 = vrot.lane.b32.xlu0 %v1358, 83
        %v1366 = vpop.permute.xlu0 %1365
        %vm1367 = vcmask 678912
        %v1368 = vsel %vm1367, %v1360, %v1362
        %v1369 = vsel %vm1367, %v1362, %v1364
        %v1370 = vsel %vm1367, %v1364, %v1366
        %v1372 = vsel %vm204, %v1339, 0
        %v1375 = vsel %vm208, %v1368, 0
        %v1378 = vsel %vm208, %v1369, 0
        %v1381 = vsel %vm208, %v1370, 0
        %v1384 = vsel %vm208, %v1366, 0
        %1386 = vmatprep.subr.bf16.mxu0 %v1378
        %1387 = vmatpush1.bf16.msra.mxu0 %v1375
        %1388 = vmatprep.subr.bf16.mxu0 0
        %1389 = vmatpush1.bf16.msra.mxu0 0
        %1390 = vmatprep.subr.bf16.mxu0 0
        %1391 = vmatpush1.bf16.msra.mxu0 0
        %1392 = vmatprep.subr.bf16.mxu0 0
        %1393 = vmatpush1.bf16.msra.mxu0 0
        %1394 = vmatprep.subr.bf16.mxu0 0
        %1395 = vmatpush1.bf16.msra.mxu0 0
        %1396 = vmatprep.subr.bf16.mxu0 0
        %1397 = vmatpush1.bf16.msra.mxu0 0
        %1398 = vmatprep.subr.bf16.mxu0 0
        %1399 = vmatpush1.bf16.msra.mxu0 0
        %1400 = vmatprep.subr.bf16.mxu0 0
        %1401 = vmatpush1.bf16.msra.mxu0 0
        %1402 = vmatprep.subr.bf16.mxu0 0
        %1403 = vmatpush1.bf16.msra.mxu0 0
        %1404 = vmatprep.subr.bf16.mxu0 0
        %1405 = vmatpush1.bf16.msra.mxu0 0
        %1406 = vmatprep.subr.bf16.mxu0 0
        %1407 = vmatpush1.bf16.msra.mxu0 0
        %1408 = vmatprep.subr.bf16.mxu0 0
        %1409 = vmatpush1.bf16.msra.mxu0 0
        %1410 = vmatprep.subr.bf16.mxu0 0
        %1411 = vmatpush1.bf16.msra.mxu0 0
        %1412 = vmatprep.subr.bf16.mxu0 0
        %1413 = vmatpush1.bf16.msra.mxu0 0
        %1414 = vmatprep.subr.bf16.mxu0 0
        %1415 = vmatpush1.bf16.msra.mxu0 0
        %1416 = vmatprep.subr.bf16.mxu0 0
        %1417 = vmatpush1.bf16.msra.mxu0 0
        %1418 = vmatprep.mubr.bf16.mxu0 0
        %1419 = vmatmul.mubr.bf16.gmra.mrb[0].mxu0 %v1372
        %v1420 = vpop.f32.mrb[0].mxu0
        %v1421 = vadd.f32 0.0, %v1420
        %v1422 = vpop.f32.mrb[0].mxu0
        %v1423 = vadd.f32 0.0, %v1422
        %v1424 = vpop.f32.mrb[0].mxu0
        %v1425 = vpop.f32.mrb[0].mxu0
        %1426 = vdwg.mxu0
        %1427 = vmatprep.subr.bf16.mxu0 %v1384
        %1428 = vmatpush1.bf16.msra.mxu0 %v1381
        %1429 = vmatprep.subr.bf16.mxu0 0
        %1430 = vmatpush1.bf16.msra.mxu0 0
        %1431 = vmatprep.subr.bf16.mxu0 0
        %1432 = vmatpush1.bf16.msra.mxu0 0
        %1433 = vmatprep.subr.bf16.mxu0 0
        %1434 = vmatpush1.bf16.msra.mxu0 0
        %1435 = vmatprep.subr.bf16.mxu0 0
        %1436 = vmatpush1.bf16.msra.mxu0 0
        %1437 = vmatprep.subr.bf16.mxu0 0
        %1438 = vmatpush1.bf16.msra.mxu0 0
        %1439 = vmatprep.subr.bf16.mxu0 0
        %1440 = vmatpush1.bf16.msra.mxu0 0
        %1441 = vmatprep.subr.bf16.mxu0 0
        %1442 = vmatpush1.bf16.msra.mxu0 0
        %1443 = vmatprep.subr.bf16.mxu0 0
        %1444 = vmatpush1.bf16.msra.mxu0 0
        %1445 = vmatprep.subr.bf16.mxu0 0
        %1446 = vmatpush1.bf16.msra.mxu0 0
        %1447 = vmatprep.subr.bf16.mxu0 0
        %1448 = vmatpush1.bf16.msra.mxu0 0
        %1449 = vmatprep.subr.bf16.mxu0 0
        %1450 = vmatpush1.bf16.msra.mxu0 0
        %1451 = vmatprep.subr.bf16.mxu0 0
        %1452 = vmatpush1.bf16.msra.mxu0 0
        %1453 = vmatprep.subr.bf16.mxu0 0
        %1454 = vmatpush1.bf16.msra.mxu0 0
        %1455 = vmatprep.subr.bf16.mxu0 0
        %1456 = vmatpush1.bf16.msra.mxu0 0
        %1457 = vmatprep.subr.bf16.mxu0 0
        %1458 = vmatpush1.bf16.msra.mxu0 0
        %1459 = vmatprep.mubr.bf16.mxu0 0
        %1460 = vmatmul.mubr.bf16.gmra.mrb[0].mxu0 %v1372
        %v1461 = vpop.f32.mrb[0].mxu0
        %v1462 = vadd.f32 0.0, %v1461
        %v1463 = vpop.f32.mrb[0].mxu0
        %v1464 = vadd.f32 0.0, %v1463
        %v1465 = vpop.f32.mrb[0].mxu0
        %v1466 = vpop.f32.mrb[0].mxu0
        %1467 = vdwg.mxu0
        %v1468 = vadd.f32 %v1334, %v1421
        %v1469 = vadd.f32 %v1335, %v1423
        %v1470 = vadd.f32 %v1336, %v1462
        %v1471 = vadd.f32 %v1337, %v1464
        %s1472 = scalar_lea.vmem %s1, 40
        %v1473 = vld [vmem:[%s1472] sm:$0xf]
        %v1474 = vld [vmem:[%s168] sm:$0xff]
        %v1476 = vcombine.high %v1474, %v1474
        %v1478 = vunpack.c.l.s4 1983009808
        %v1479 = vunpack.c.0.s8 %v1478
        %v1480 = vlaneseq
        %v1481 = vshrl.u32 %v1480, 7
        %v1482 = vsub.s32 %v1479, %v1481
        %v1483 = vrot.slane %v1474, %v1482
        %v1485 = vunpack.c.l.s4 1983009808
        %v1486 = vunpack.c.0.s8 %v1485
        %v1487 = vlaneseq
        %v1488 = vshrl.u32 %v1487, 7
        %v1489 = vsub.s32 %v1486, %v1488
        %v1490 = vrot.slane %v1476, %v1489
        %v1491 = vcombine.high %v1483, %v1483
        %v1492 = vcombine.high %v1490, %v1490
        %1493 = vrot.lane.b32.xlu0 %v1483, 82
        %v1494 = vpop.permute.xlu0 %1493
        %1495 = vrot.lane.b32.xlu0 %v1491, 82
        %v1496 = vpop.permute.xlu0 %1495
        %1497 = vrot.lane.b32.xlu0 %v1490, 82
        %v1498 = vpop.permute.xlu0 %1497
        %1499 = vrot.lane.b32.xlu0 %v1492, 82
        %v1500 = vpop.permute.xlu0 %1499
        %vm1501 = vcmask 670720
        %v1502 = vsel %vm1501, %v1494, %v1496
        %v1503 = vsel %vm1501, %v1496, %v1498
        %v1504 = vsel %vm1501, %v1498, %v1500
        %v1506 = vsel %vm204, %v1473, 0
        %v1509 = vsel %vm208, %v1502, 0
        %v1512 = vsel %vm208, %v1503, 0
        %v1515 = vsel %vm208, %v1504, 0
        %v1518 = vsel %vm208, %v1500, 0
        %1520 = vmatprep.subr.bf16.mxu0 %v1512
        %1521 = vmatpush1.bf16.msra.mxu0 %v1509
        %1522 = vmatprep.subr.bf16.mxu0 0
        %1523 = vmatpush1.bf16.msra.mxu0 0
        %1524 = vmatprep.subr.bf16.mxu0 0
        %1525 = vmatpush1.bf16.msra.mxu0 0
        %1526 = vmatprep.subr.bf16.mxu0 0
        %1527 = vmatpush1.bf16.msra.mxu0 0
        %1528 = vmatprep.subr.bf16.mxu0 0
        %1529 = vmatpush1.bf16.msra.mxu0 0
        %1530 = vmatprep.subr.bf16.mxu0 0
        %1531 = vmatpush1.bf16.msra.mxu0 0
        %1532 = vmatprep.subr.bf16.mxu0 0
        %1533 = vmatpush1.bf16.msra.mxu0 0
        %1534 = vmatprep.subr.bf16.mxu0 0
        %1535 = vmatpush1.bf16.msra.mxu0 0
        %1536 = vmatprep.subr.bf16.mxu0 0
        %1537 = vmatpush1.bf16.msra.mxu0 0
        %1538 = vmatprep.subr.bf16.mxu0 0
        %1539 = vmatpush1.bf16.msra.mxu0 0
        %1540 = vmatprep.subr.bf16.mxu0 0
        %1541 = vmatpush1.bf16.msra.mxu0 0
        %1542 = vmatprep.subr.bf16.mxu0 0
        %1543 = vmatpush1.bf16.msra.mxu0 0
        %1544 = vmatprep.subr.bf16.mxu0 0
        %1545 = vmatpush1.bf16.msra.mxu0 0
        %1546 = vmatprep.subr.bf16.mxu0 0
        %1547 = vmatpush1.bf16.msra.mxu0 0
        %1548 = vmatprep.subr.bf16.mxu0 0
        %1549 = vmatpush1.bf16.msra.mxu0 0
        %1550 = vmatprep.subr.bf16.mxu0 0
        %1551 = vmatpush1.bf16.msra.mxu0 0
        %1552 = vmatprep.mubr.bf16.mxu0 0
        %1553 = vmatmul.mubr.bf16.gmra.mrb[0].mxu0 %v1506
        %v1554 = vpop.f32.mrb[0].mxu0
        %v1555 = vadd.f32 0.0, %v1554
        %v1556 = vpop.f32.mrb[0].mxu0
        %v1557 = vadd.f32 0.0, %v1556
        %v1558 = vpop.f32.mrb[0].mxu0
        %v1559 = vpop.f32.mrb[0].mxu0
        %1560 = vdwg.mxu0
        %1561 = vmatprep.subr.bf16.mxu0 %v1518
        %1562 = vmatpush1.bf16.msra.mxu0 %v1515
        %1563 = vmatprep.subr.bf16.mxu0 0
        %1564 = vmatpush1.bf16.msra.mxu0 0
        %1565 = vmatprep.subr.bf16.mxu0 0
        %1566 = vmatpush1.bf16.msra.mxu0 0
        %1567 = vmatprep.subr.bf16.mxu0 0
        %1568 = vmatpush1.bf16.msra.mxu0 0
        %1569 = vmatprep.subr.bf16.mxu0 0
        %1570 = vmatpush1.bf16.msra.mxu0 0
        %1571 = vmatprep.subr.bf16.mxu0 0
        %1572 = vmatpush1.bf16.msra.mxu0 0
        %1573 = vmatprep.subr.bf16.mxu0 0
        %1574 = vmatpush1.bf16.msra.mxu0 0
        %1575 = vmatprep.subr.bf16.mxu0 0
        %1576 = vmatpush1.bf16.msra.mxu0 0
        %1577 = vmatprep.subr.bf16.mxu0 0
        %1578 = vmatpush1.bf16.msra.mxu0 0
        %1579 = vmatprep.subr.bf16.mxu0 0
        %1580 = vmatpush1.bf16.msra.mxu0 0
        %1581 = vmatprep.subr.bf16.mxu0 0
        %1582 = vmatpush1.bf16.msra.mxu0 0
        %1583 = vmatprep.subr.bf16.mxu0 0
        %1584 = vmatpush1.bf16.msra.mxu0 0
        %1585 = vmatprep.subr.bf16.mxu0 0
        %1586 = vmatpush1.bf16.msra.mxu0 0
        %1587 = vmatprep.subr.bf16.mxu0 0
        %1588 = vmatpush1.bf16.msra.mxu0 0
        %1589 = vmatprep.subr.bf16.mxu0 0
        %1590 = vmatpush1.bf16.msra.mxu0 0
        %1591 = vmatprep.subr.bf16.mxu0 0
        %1592 = vmatpush1.bf16.msra.mxu0 0
        %1593 = vmatprep.mubr.bf16.mxu0 0
        %1594 = vmatmul.mubr.bf16.gmra.mrb[0].mxu0 %v1506
        %v1595 = vpop.f32.mrb[0].mxu0
        %v1596 = vadd.f32 0.0, %v1595
        %v1597 = vpop.f32.mrb[0].mxu0
        %v1598 = vadd.f32 0.0, %v1597
        %v1599 = vpop.f32.mrb[0].mxu0
        %v1600 = vpop.f32.mrb[0].mxu0
        %1601 = vdwg.mxu0
        %v1602 = vadd.f32 %v1468, %v1555
        %v1603 = vadd.f32 %v1469, %v1557
        %v1604 = vadd.f32 %v1470, %v1596
        %v1605 = vadd.f32 %v1471, %v1598
        %s1606 = scalar_lea.vmem %s1, 44
        %v1607 = vld [vmem:[%s1606] sm:$0xf]
        %v1608 = vld [vmem:[%s168] sm:$0xff]
        %v1610 = vcombine.high %v1608, %v1608
        %v1612 = vunpack.c.l.s4 1983009808
        %v1613 = vunpack.c.0.s8 %v1612
        %v1614 = vlaneseq
        %v1615 = vshrl.u32 %v1614, 7
        %v1616 = vsub.s32 %v1613, %v1615
        %v1617 = vrot.slane %v1608, %v1616
        %v1619 = vunpack.c.l.s4 1983009808
        %v1620 = vunpack.c.0.s8 %v1619
        %v1621 = vlaneseq
        %v1622 = vshrl.u32 %v1621, 7
        %v1623 = vsub.s32 %v1620, %v1622
        %v1624 = vrot.slane %v1610, %v1623
        %v1625 = vcombine.high %v1617, %v1617
        %v1626 = vcombine.high %v1624, %v1624
        %1627 = vrot.lane.b32.xlu0 %v1617, 81
        %v1628 = vpop.permute.xlu0 %1627
        %1629 = vrot.lane.b32.xlu0 %v1625, 81
        %v1630 = vpop.permute.xlu0 %1629
        %1631 = vrot.lane.b32.xlu0 %v1624, 81
        %v1632 = vpop.permute.xlu0 %1631
        %1633 = vrot.lane.b32.xlu0 %v1626, 81
        %v1634 = vpop.permute.xlu0 %1633
        %vm1635 = vcmask 662528
        %v1636 = vsel %vm1635, %v1628, %v1630
        %v1637 = vsel %vm1635, %v1630, %v1632
        %v1638 = vsel %vm1635, %v1632, %v1634
        %v1640 = vsel %vm204, %v1607, 0
        %v1643 = vsel %vm208, %v1636, 0
        %v1646 = vsel %vm208, %v1637, 0
        %v1649 = vsel %vm208, %v1638, 0
        %v1652 = vsel %vm208, %v1634, 0
        %1654 = vmatprep.subr.bf16.mxu0 %v1646
        %1655 = vmatpush1.bf16.msra.mxu0 %v1643
        %1656 = vmatprep.subr.bf16.mxu0 0
        %1657 = vmatpush1.bf16.msra.mxu0 0
        %1658 = vmatprep.subr.bf16.mxu0 0
        %1659 = vmatpush1.bf16.msra.mxu0 0
        %1660 = vmatprep.subr.bf16.mxu0 0
        %1661 = vmatpush1.bf16.msra.mxu0 0
        %1662 = vmatprep.subr.bf16.mxu0 0
        %1663 = vmatpush1.bf16.msra.mxu0 0
        %1664 = vmatprep.subr.bf16.mxu0 0
        %1665 = vmatpush1.bf16.msra.mxu0 0
        %1666 = vmatprep.subr.bf16.mxu0 0
        %1667 = vmatpush1.bf16.msra.mxu0 0
        %1668 = vmatprep.subr.bf16.mxu0 0
        %1669 = vmatpush1.bf16.msra.mxu0 0
        %1670 = vmatprep.subr.bf16.mxu0 0
        %1671 = vmatpush1.bf16.msra.mxu0 0
        %1672 = vmatprep.subr.bf16.mxu0 0
        %1673 = vmatpush1.bf16.msra.mxu0 0
        %1674 = vmatprep.subr.bf16.mxu0 0
        %1675 = vmatpush1.bf16.msra.mxu0 0
        %1676 = vmatprep.subr.bf16.mxu0 0
        %1677 = vmatpush1.bf16.msra.mxu0 0
        %1678 = vmatprep.subr.bf16.mxu0 0
        %1679 = vmatpush1.bf16.msra.mxu0 0
        %1680 = vmatprep.subr.bf16.mxu0 0
        %1681 = vmatpush1.bf16.msra.mxu0 0
        %1682 = vmatprep.subr.bf16.mxu0 0
        %1683 = vmatpush1.bf16.msra.mxu0 0
        %1684 = vmatprep.subr.bf16.mxu0 0
        %1685 = vmatpush1.bf16.msra.mxu0 0
        %1686 = vmatprep.mubr.bf16.mxu0 0
        %1687 = vmatmul.mubr.bf16.gmra.mrb[0].mxu0 %v1640
        %v1688 = vpop.f32.mrb[0].mxu0
        %v1689 = vadd.f32 0.0, %v1688
        %v1690 = vpop.f32.mrb[0].mxu0
        %v1691 = vadd.f32 0.0, %v1690
        %v1692 = vpop.f32.mrb[0].mxu0
        %v1693 = vpop.f32.mrb[0].mxu0
        %1694 = vdwg.mxu0
        %1695 = vmatprep.subr.bf16.mxu0 %v1652
        %1696 = vmatpush1.bf16.msra.mxu0 %v1649
        %1697 = vmatprep.subr.bf16.mxu0 0
        %1698 = vmatpush1.bf16.msra.mxu0 0
        %1699 = vmatprep.subr.bf16.mxu0 0
        %1700 = vmatpush1.bf16.msra.mxu0 0
        %1701 = vmatprep.subr.bf16.mxu0 0
        %1702 = vmatpush1.bf16.msra.mxu0 0
        %1703 = vmatprep.subr.bf16.mxu0 0
        %1704 = vmatpush1.bf16.msra.mxu0 0
        %1705 = vmatprep.subr.bf16.mxu0 0
        %1706 = vmatpush1.bf16.msra.mxu0 0
        %1707 = vmatprep.subr.bf16.mxu0 0
        %1708 = vmatpush1.bf16.msra.mxu0 0
        %1709 = vmatprep.subr.bf16.mxu0 0
        %1710 = vmatpush1.bf16.msra.mxu0 0
        %1711 = vmatprep.subr.bf16.mxu0 0
        %1712 = vmatpush1.bf16.msra.mxu0 0
        %1713 = vmatprep.subr.bf16.mxu0 0
        %1714 = vmatpush1.bf16.msra.mxu0 0
        %1715 = vmatprep.subr.bf16.mxu0 0
        %1716 = vmatpush1.bf16.msra.mxu0 0
        %1717 = vmatprep.subr.bf16.mxu0 0
        %1718 = vmatpush1.bf16.msra.mxu0 0
        %1719 = vmatprep.subr.bf16.mxu0 0
        %1720 = vmatpush1.bf16.msra.mxu0 0
        %1721 = vmatprep.subr.bf16.mxu0 0
        %1722 = vmatpush1.bf16.msra.mxu0 0
        %1723 = vmatprep.subr.bf16.mxu0 0
        %1724 = vmatpush1.bf16.msra.mxu0 0
        %1725 = vmatprep.subr.bf16.mxu0 0
        %1726 = vmatpush1.bf16.msra.mxu0 0
        %1727 = vmatprep.mubr.bf16.mxu0 0
        %1728 = vmatmul.mubr.bf16.gmra.mrb[0].mxu0 %v1640
        %v1729 = vpop.f32.mrb[0].mxu0
        %v1730 = vadd.f32 0.0, %v1729
        %v1731 = vpop.f32.mrb[0].mxu0
        %v1732 = vadd.f32 0.0, %v1731
        %v1733 = vpop.f32.mrb[0].mxu0
        %v1734 = vpop.f32.mrb[0].mxu0
        %1735 = vdwg.mxu0
        %v1736 = vadd.f32 %v1602, %v1689
        %v1737 = vadd.f32 %v1603, %v1691
        %v1738 = vadd.f32 %v1604, %v1730
        %v1739 = vadd.f32 %v1605, %v1732
        %s1740 = scalar_lea.vmem %s1, 48
        %v1741 = vld [vmem:[%s1740] sm:$0xf]
        %v1742 = vld [vmem:[%s168] sm:$0xff]
        %v1744 = vcombine.high %v1742, %v1742
        %v1746 = vunpack.c.l.s4 1983009808
        %v1747 = vunpack.c.0.s8 %v1746
        %v1748 = vlaneseq
        %v1749 = vshrl.u32 %v1748, 7
        %v1750 = vsub.s32 %v1747, %v1749
        %v1751 = vrot.slane %v1742, %v1750
        %v1753 = vunpack.c.l.s4 1983009808
        %v1754 = vunpack.c.0.s8 %v1753
        %v1755 = vlaneseq
        %v1756 = vshrl.u32 %v1755, 7
        %v1757 = vsub.s32 %v1754, %v1756
        %v1758 = vrot.slane %v1744, %v1757
        %v1759 = vcombine.high %v1751, %v1751
        %v1760 = vcombine.high %v1758, %v1758
        %1761 = vrot.lane.b32.xlu0 %v1751, 62
        %v1762 = vpop.permute.xlu0 %1761
        %1763 = vrot.lane.b32.xlu0 %v1759, 62
        %v1764 = vpop.permute.xlu0 %1763
        %1765 = vrot.lane.b32.xlu0 %v1758, 62
        %v1766 = vpop.permute.xlu0 %1765
        %1767 = vrot.lane.b32.xlu0 %v1760, 62
        %v1768 = vpop.permute.xlu0 %1767
        %vm1769 = vcmask 506880
        %v1770 = vsel %vm1769, %v1762, %v1764
        %v1771 = vsel %vm1769, %v1764, %v1766
        %v1772 = vsel %vm1769, %v1766, %v1768
        %v1774 = vsel %vm204, %v1741, 0
        %v1777 = vsel %vm208, %v1770, 0
        %v1780 = vsel %vm208, %v1771, 0
        %v1783 = vsel %vm208, %v1772, 0
        %v1786 = vsel %vm208, %v1768, 0
        %1788 = vmatprep.subr.bf16.mxu0 %v1780
        %1789 = vmatpush1.bf16.msra.mxu0 %v1777
        %1790 = vmatprep.subr.bf16.mxu0 0
        %1791 = vmatpush1.bf16.msra.mxu0 0
        %1792 = vmatprep.subr.bf16.mxu0 0
        %1793 = vmatpush1.bf16.msra.mxu0 0
        %1794 = vmatprep.subr.bf16.mxu0 0
        %1795 = vmatpush1.bf16.msra.mxu0 0
        %1796 = vmatprep.subr.bf16.mxu0 0
        %1797 = vmatpush1.bf16.msra.mxu0 0
        %1798 = vmatprep.subr.bf16.mxu0 0
        %1799 = vmatpush1.bf16.msra.mxu0 0
        %1800 = vmatprep.subr.bf16.mxu0 0
        %1801 = vmatpush1.bf16.msra.mxu0 0
        %1802 = vmatprep.subr.bf16.mxu0 0
        %1803 = vmatpush1.bf16.msra.mxu0 0
        %1804 = vmatprep.subr.bf16.mxu0 0
        %1805 = vmatpush1.bf16.msra.mxu0 0
        %1806 = vmatprep.subr.bf16.mxu0 0
        %1807 = vmatpush1.bf16.msra.mxu0 0
        %1808 = vmatprep.subr.bf16.mxu0 0
        %1809 = vmatpush1.bf16.msra.mxu0 0
        %1810 = vmatprep.subr.bf16.mxu0 0
        %1811 = vmatpush1.bf16.msra.mxu0 0
        %1812 = vmatprep.subr.bf16.mxu0 0
        %1813 = vmatpush1.bf16.msra.mxu0 0
        %1814 = vmatprep.subr.bf16.mxu0 0
        %1815 = vmatpush1.bf16.msra.mxu0 0
        %1816 = vmatprep.subr.bf16.mxu0 0
        %1817 = vmatpush1.bf16.msra.mxu0 0
        %1818 = vmatprep.subr.bf16.mxu0 0
        %1819 = vmatpush1.bf16.msra.mxu0 0
        %1820 = vmatprep.mubr.bf16.mxu0 0
        %1821 = vmatmul.mubr.bf16.gmra.mrb[0].mxu0 %v1774
        %v1822 = vpop.f32.mrb[0].mxu0
        %v1823 = vadd.f32 0.0, %v1822
        %v1824 = vpop.f32.mrb[0].mxu0
        %v1825 = vadd.f32 0.0, %v1824
        %v1826 = vpop.f32.mrb[0].mxu0
        %v1827 = vpop.f32.mrb[0].mxu0
        %1828 = vdwg.mxu0
        %1829 = vmatprep.subr.bf16.mxu0 %v1786
        %1830 = vmatpush1.bf16.msra.mxu0 %v1783
        %1831 = vmatprep.subr.bf16.mxu0 0
        %1832 = vmatpush1.bf16.msra.mxu0 0
        %1833 = vmatprep.subr.bf16.mxu0 0
        %1834 = vmatpush1.bf16.msra.mxu0 0
        %1835 = vmatprep.subr.bf16.mxu0 0
        %1836 = vmatpush1.bf16.msra.mxu0 0
        %1837 = vmatprep.subr.bf16.mxu0 0
        %1838 = vmatpush1.bf16.msra.mxu0 0
        %1839 = vmatprep.subr.bf16.mxu0 0
        %1840 = vmatpush1.bf16.msra.mxu0 0
        %1841 = vmatprep.subr.bf16.mxu0 0
        %1842 = vmatpush1.bf16.msra.mxu0 0
        %1843 = vmatprep.subr.bf16.mxu0 0
        %1844 = vmatpush1.bf16.msra.mxu0 0
        %1845 = vmatprep.subr.bf16.mxu0 0
        %1846 = vmatpush1.bf16.msra.mxu0 0
        %1847 = vmatprep.subr.bf16.mxu0 0
        %1848 = vmatpush1.bf16.msra.mxu0 0
        %1849 = vmatprep.subr.bf16.mxu0 0
        %1850 = vmatpush1.bf16.msra.mxu0 0
        %1851 = vmatprep.subr.bf16.mxu0 0
        %1852 = vmatpush1.bf16.msra.mxu0 0
        %1853 = vmatprep.subr.bf16.mxu0 0
        %1854 = vmatpush1.bf16.msra.mxu0 0
        %1855 = vmatprep.subr.bf16.mxu0 0
        %1856 = vmatpush1.bf16.msra.mxu0 0
        %1857 = vmatprep.subr.bf16.mxu0 0
        %1858 = vmatpush1.bf16.msra.mxu0 0
        %1859 = vmatprep.subr.bf16.mxu0 0
        %1860 = vmatpush1.bf16.msra.mxu0 0
        %1861 = vmatprep.mubr.bf16.mxu0 0
        %1862 = vmatmul.mubr.bf16.gmra.mrb[0].mxu0 %v1774
        %v1863 = vpop.f32.mrb[0].mxu0
        %v1864 = vadd.f32 0.0, %v1863
        %v1865 = vpop.f32.mrb[0].mxu0
        %v1866 = vadd.f32 0.0, %v1865
        %v1867 = vpop.f32.mrb[0].mxu0
        %v1868 = vpop.f32.mrb[0].mxu0
        %1869 = vdwg.mxu0
        %v1870 = vadd.f32 %v1736, %v1823
        %v1871 = vadd.f32 %v1737, %v1825
        %v1872 = vadd.f32 %v1738, %v1864
        %v1873 = vadd.f32 %v1739, %v1866
        %s1874 = scalar_lea.vmem %s1, 52
        %v1875 = vld [vmem:[%s1874] sm:$0xf]
        %v1876 = vld [vmem:[%s168] sm:$0xff]
        %v1878 = vcombine.high %v1876, %v1876
        %v1880 = vunpack.c.l.s4 1983009808
        %v1881 = vunpack.c.0.s8 %v1880
        %v1882 = vlaneseq
        %v1883 = vshrl.u32 %v1882, 7
        %v1884 = vsub.s32 %v1881, %v1883
        %v1885 = vrot.slane %v1876, %v1884
        %v1887 = vunpack.c.l.s4 1983009808
        %v1888 = vunpack.c.0.s8 %v1887
        %v1889 = vlaneseq
        %v1890 = vshrl.u32 %v1889, 7
        %v1891 = vsub.s32 %v1888, %v1890
        %v1892 = vrot.slane %v1878, %v1891
        %v1893 = vcombine.high %v1885, %v1885
        %v1894 = vcombine.high %v1892, %v1892
        %1895 = vrot.lane.b32.xlu0 %v1885, 61
        %v1896 = vpop.permute.xlu0 %1895
        %1897 = vrot.lane.b32.xlu0 %v1893, 61
        %v1898 = vpop.permute.xlu0 %1897
        %1899 = vrot.lane.b32.xlu0 %v1892, 61
        %v1900 = vpop.permute.xlu0 %1899
        %1901 = vrot.lane.b32.xlu0 %v1894, 61
        %v1902 = vpop.permute.xlu0 %1901
        %vm1903 = vcmask 498688
        %v1904 = vsel %vm1903, %v1896, %v1898
        %v1905 = vsel %vm1903, %v1898, %v1900
        %v1906 = vsel %vm1903, %v1900, %v1902
        %v1908 = vsel %vm204, %v1875, 0
        %v1911 = vsel %vm208, %v1904, 0
        %v1914 = vsel %vm208, %v1905, 0
        %v1917 = vsel %vm208, %v1906, 0
        %v1920 = vsel %vm208, %v1902, 0
        %1922 = vmatprep.subr.bf16.mxu0 %v1914
        %1923 = vmatpush1.bf16.msra.mxu0 %v1911
        %1924 = vmatprep.subr.bf16.mxu0 0
        %1925 = vmatpush1.bf16.msra.mxu0 0
        %1926 = vmatprep.subr.bf16.mxu0 0
        %1927 = vmatpush1.bf16.msra.mxu0 0
        %1928 = vmatprep.subr.bf16.mxu0 0
        %1929 = vmatpush1.bf16.msra.mxu0 0
        %1930 = vmatprep.subr.bf16.mxu0 0
        %1931 = vmatpush1.bf16.msra.mxu0 0
        %1932 = vmatprep.subr.bf16.mxu0 0
        %1933 = vmatpush1.bf16.msra.mxu0 0
        %1934 = vmatprep.subr.bf16.mxu0 0
        %1935 = vmatpush1.bf16.msra.mxu0 0
        %1936 = vmatprep.subr.bf16.mxu0 0
        %1937 = vmatpush1.bf16.msra.mxu0 0
        %1938 = vmatprep.subr.bf16.mxu0 0
        %1939 = vmatpush1.bf16.msra.mxu0 0
        %1940 = vmatprep.subr.bf16.mxu0 0
        %1941 = vmatpush1.bf16.msra.mxu0 0
        %1942 = vmatprep.subr.bf16.mxu0 0
        %1943 = vmatpush1.bf16.msra.mxu0 0
        %1944 = vmatprep.subr.bf16.mxu0 0
        %1945 = vmatpush1.bf16.msra.mxu0 0
        %1946 = vmatprep.subr.bf16.mxu0 0
        %1947 = vmatpush1.bf16.msra.mxu0 0
        %1948 = vmatprep.subr.bf16.mxu0 0
        %1949 = vmatpush1.bf16.msra.mxu0 0
        %1950 = vmatprep.subr.bf16.mxu0 0
        %1951 = vmatpush1.bf16.msra.mxu0 0
        %1952 = vmatprep.subr.bf16.mxu0 0
        %1953 = vmatpush1.bf16.msra.mxu0 0
        %1954 = vmatprep.mubr.bf16.mxu0 0
        %1955 = vmatmul.mubr.bf16.gmra.mrb[0].mxu0 %v1908
        %v1956 = vpop.f32.mrb[0].mxu0
        %v1957 = vadd.f32 0.0, %v1956
        %v1958 = vpop.f32.mrb[0].mxu0
        %v1959 = vadd.f32 0.0, %v1958
        %v1960 = vpop.f32.mrb[0].mxu0
        %v1961 = vpop.f32.mrb[0].mxu0
        %1962 = vdwg.mxu0
        %1963 = vmatprep.subr.bf16.mxu0 %v1920
        %1964 = vmatpush1.bf16.msra.mxu0 %v1917
        %1965 = vmatprep.subr.bf16.mxu0 0
        %1966 = vmatpush1.bf16.msra.mxu0 0
        %1967 = vmatprep.subr.bf16.mxu0 0
        %1968 = vmatpush1.bf16.msra.mxu0 0
        %1969 = vmatprep.subr.bf16.mxu0 0
        %1970 = vmatpush1.bf16.msra.mxu0 0
        %1971 = vmatprep.subr.bf16.mxu0 0
        %1972 = vmatpush1.bf16.msra.mxu0 0
        %1973 = vmatprep.subr.bf16.mxu0 0
        %1974 = vmatpush1.bf16.msra.mxu0 0
        %1975 = vmatprep.subr.bf16.mxu0 0
        %1976 = vmatpush1.bf16.msra.mxu0 0
        %1977 = vmatprep.subr.bf16.mxu0 0
        %1978 = vmatpush1.bf16.msra.mxu0 0
        %1979 = vmatprep.subr.bf16.mxu0 0
        %1980 = vmatpush1.bf16.msra.mxu0 0
        %1981 = vmatprep.subr.bf16.mxu0 0
        %1982 = vmatpush1.bf16.msra.mxu0 0
        %1983 = vmatprep.subr.bf16.mxu0 0
        %1984 = vmatpush1.bf16.msra.mxu0 0
        %1985 = vmatprep.subr.bf16.mxu0 0
        %1986 = vmatpush1.bf16.msra.mxu0 0
        %1987 = vmatprep.subr.bf16.mxu0 0
        %1988 = vmatpush1.bf16.msra.mxu0 0
        %1989 = vmatprep.subr.bf16.mxu0 0
        %1990 = vmatpush1.bf16.msra.mxu0 0
        %1991 = vmatprep.subr.bf16.mxu0 0
        %1992 = vmatpush1.bf16.msra.mxu0 0
        %1993 = vmatprep.subr.bf16.mxu0 0
        %1994 = vmatpush1.bf16.msra.mxu0 0
        %1995 = vmatprep.mubr.bf16.mxu0 0
        %1996 = vmatmul.mubr.bf16.gmra.mrb[0].mxu0 %v1908
        %v1997 = vpop.f32.mrb[0].mxu0
        %v1998 = vadd.f32 0.0, %v1997
        %v1999 = vpop.f32.mrb[0].mxu0
        %v2000 = vadd.f32 0.0, %v1999
        %v2001 = vpop.f32.mrb[0].mxu0
        %v2002 = vpop.f32.mrb[0].mxu0
        %2003 = vdwg.mxu0
        %v2004 = vadd.f32 %v1870, %v1957
        %v2005 = vadd.f32 %v1871, %v1959
        %v2006 = vadd.f32 %v1872, %v1998
        %v2007 = vadd.f32 %v1873, %v2000
        %s2008 = scalar_lea.vmem %s1, 56
        %v2009 = vld [vmem:[%s2008] sm:$0xf]
        %v2010 = vld [vmem:[%s168] sm:$0xff]
        %v2012 = vcombine.high %v2010, %v2010
        %v2014 = vunpack.c.l.s4 1983009808
        %v2015 = vunpack.c.0.s8 %v2014
        %v2016 = vlaneseq
        %v2017 = vshrl.u32 %v2016, 7
        %v2018 = vsub.s32 %v2015, %v2017
        %v2019 = vrot.slane %v2010, %v2018
        %v2021 = vunpack.c.l.s4 1983009808
        %v2022 = vunpack.c.0.s8 %v2021
        %v2023 = vlaneseq
        %v2024 = vshrl.u32 %v2023, 7
        %v2025 = vsub.s32 %v2022, %v2024
        %v2026 = vrot.slane %v2012, %v2025
        %v2027 = vcombine.high %v2019, %v2019
        %v2028 = vcombine.high %v2026, %v2026
        %2029 = vrot.lane.b32.xlu0 %v2019, 60
        %v2030 = vpop.permute.xlu0 %2029
        %2031 = vrot.lane.b32.xlu0 %v2027, 60
        %v2032 = vpop.permute.xlu0 %2031
        %2033 = vrot.lane.b32.xlu0 %v2026, 60
        %v2034 = vpop.permute.xlu0 %2033
        %2035 = vrot.lane.b32.xlu0 %v2028, 60
        %v2036 = vpop.permute.xlu0 %2035
        %vm2037 = vcmask 490496
        %v2038 = vsel %vm2037, %v2030, %v2032
        %v2039 = vsel %vm2037, %v2032, %v2034
        %v2040 = vsel %vm2037, %v2034, %v2036
        %v2042 = vsel %vm204, %v2009, 0
        %v2045 = vsel %vm208, %v2038, 0
        %v2048 = vsel %vm208, %v2039, 0
        %v2051 = vsel %vm208, %v2040, 0
        %v2054 = vsel %vm208, %v2036, 0
        %2056 = vmatprep.subr.bf16.mxu0 %v2048
        %2057 = vmatpush1.bf16.msra.mxu0 %v2045
        %2058 = vmatprep.subr.bf16.mxu0 0
        %2059 = vmatpush1.bf16.msra.mxu0 0
        %2060 = vmatprep.subr.bf16.mxu0 0
        %2061 = vmatpush1.bf16.msra.mxu0 0
        %2062 = vmatprep.subr.bf16.mxu0 0
        %2063 = vmatpush1.bf16.msra.mxu0 0
        %2064 = vmatprep.subr.bf16.mxu0 0
        %2065 = vmatpush1.bf16.msra.mxu0 0
        %2066 = vmatprep.subr.bf16.mxu0 0
        %2067 = vmatpush1.bf16.msra.mxu0 0
        %2068 = vmatprep.subr.bf16.mxu0 0
        %2069 = vmatpush1.bf16.msra.mxu0 0
        %2070 = vmatprep.subr.bf16.mxu0 0
        %2071 = vmatpush1.bf16.msra.mxu0 0
        %2072 = vmatprep.subr.bf16.mxu0 0
        %2073 = vmatpush1.bf16.msra.mxu0 0
        %2074 = vmatprep.subr.bf16.mxu0 0
        %2075 = vmatpush1.bf16.msra.mxu0 0
        %2076 = vmatprep.subr.bf16.mxu0 0
        %2077 = vmatpush1.bf16.msra.mxu0 0
        %2078 = vmatprep.subr.bf16.mxu0 0
        %2079 = vmatpush1.bf16.msra.mxu0 0
        %2080 = vmatprep.subr.bf16.mxu0 0
        %2081 = vmatpush1.bf16.msra.mxu0 0
        %2082 = vmatprep.subr.bf16.mxu0 0
        %2083 = vmatpush1.bf16.msra.mxu0 0
        %2084 = vmatprep.subr.bf16.mxu0 0
        %2085 = vmatpush1.bf16.msra.mxu0 0
        %2086 = vmatprep.subr.bf16.mxu0 0
        %2087 = vmatpush1.bf16.msra.mxu0 0
        %2088 = vmatprep.mubr.bf16.mxu0 0
        %2089 = vmatmul.mubr.bf16.gmra.mrb[0].mxu0 %v2042
        %v2090 = vpop.f32.mrb[0].mxu0
        %v2091 = vadd.f32 0.0, %v2090
        %v2092 = vpop.f32.mrb[0].mxu0
        %v2093 = vadd.f32 0.0, %v2092
        %v2094 = vpop.f32.mrb[0].mxu0
        %v2095 = vpop.f32.mrb[0].mxu0
        %2096 = vdwg.mxu0
        %2097 = vmatprep.subr.bf16.mxu0 %v2054
        %2098 = vmatpush1.bf16.msra.mxu0 %v2051
        %2099 = vmatprep.subr.bf16.mxu0 0
        %2100 = vmatpush1.bf16.msra.mxu0 0
        %2101 = vmatprep.subr.bf16.mxu0 0
        %2102 = vmatpush1.bf16.msra.mxu0 0
        %2103 = vmatprep.subr.bf16.mxu0 0
        %2104 = vmatpush1.bf16.msra.mxu0 0
        %2105 = vmatprep.subr.bf16.mxu0 0
        %2106 = vmatpush1.bf16.msra.mxu0 0
        %2107 = vmatprep.subr.bf16.mxu0 0
        %2108 = vmatpush1.bf16.msra.mxu0 0
        %2109 = vmatprep.subr.bf16.mxu0 0
        %2110 = vmatpush1.bf16.msra.mxu0 0
        %2111 = vmatprep.subr.bf16.mxu0 0
        %2112 = vmatpush1.bf16.msra.mxu0 0
        %2113 = vmatprep.subr.bf16.mxu0 0
        %2114 = vmatpush1.bf16.msra.mxu0 0
        %2115 = vmatprep.subr.bf16.mxu0 0
        %2116 = vmatpush1.bf16.msra.mxu0 0
        %2117 = vmatprep.subr.bf16.mxu0 0
        %2118 = vmatpush1.bf16.msra.mxu0 0
        %2119 = vmatprep.subr.bf16.mxu0 0
        %2120 = vmatpush1.bf16.msra.mxu0 0
        %2121 = vmatprep.subr.bf16.mxu0 0
        %2122 = vmatpush1.bf16.msra.mxu0 0
        %2123 = vmatprep.subr.bf16.mxu0 0
        %2124 = vmatpush1.bf16.msra.mxu0 0
        %2125 = vmatprep.subr.bf16.mxu0 0
        %2126 = vmatpush1.bf16.msra.mxu0 0
        %2127 = vmatprep.subr.bf16.mxu0 0
        %2128 = vmatpush1.bf16.msra.mxu0 0
        %2129 = vmatprep.mubr.bf16.mxu0 0
        %2130 = vmatmul.mubr.bf16.gmra.mrb[0].mxu0 %v2042
        %v2131 = vpop.f32.mrb[0].mxu0
        %v2132 = vadd.f32 0.0, %v2131
        %v2133 = vpop.f32.mrb[0].mxu0
        %v2134 = vadd.f32 0.0, %v2133
        %v2135 = vpop.f32.mrb[0].mxu0
        %v2136 = vpop.f32.mrb[0].mxu0
        %2137 = vdwg.mxu0
        %v2138 = vadd.f32 %v2004, %v2091
        %v2139 = vadd.f32 %v2005, %v2093
        %v2140 = vadd.f32 %v2006, %v2132
        %v2141 = vadd.f32 %v2007, %v2134
        %s2142 = scalar_lea.vmem %s1, 60
        %v2143 = vld [vmem:[%s2142] sm:$0xf]
        %v2144 = vld [vmem:[%s168] sm:$0xff]
        %v2146 = vcombine.high %v2144, %v2144
        %v2148 = vunpack.c.l.s4 1983009808
        %v2149 = vunpack.c.0.s8 %v2148
        %v2150 = vlaneseq
        %v2151 = vshrl.u32 %v2150, 7
        %v2152 = vsub.s32 %v2149, %v2151
        %v2153 = vrot.slane %v2144, %v2152
        %v2155 = vunpack.c.l.s4 1983009808
        %v2156 = vunpack.c.0.s8 %v2155
        %v2157 = vlaneseq
        %v2158 = vshrl.u32 %v2157, 7
        %v2159 = vsub.s32 %v2156, %v2158
        %v2160 = vrot.slane %v2146, %v2159
        %v2161 = vcombine.high %v2153, %v2153
        %v2162 = vcombine.high %v2160, %v2160
        %2163 = vrot.lane.b32.xlu0 %v2153, 59
        %v2164 = vpop.permute.xlu0 %2163
        %2165 = vrot.lane.b32.xlu0 %v2161, 59
        %v2166 = vpop.permute.xlu0 %2165
        %2167 = vrot.lane.b32.xlu0 %v2160, 59
        %v2168 = vpop.permute.xlu0 %2167
        %2169 = vrot.lane.b32.xlu0 %v2162, 59
        %v2170 = vpop.permute.xlu0 %2169
        %vm2171 = vcmask 482304
        %v2172 = vsel %vm2171, %v2164, %v2166
        %v2173 = vsel %vm2171, %v2166, %v2168
        %v2174 = vsel %vm2171, %v2168, %v2170
        %v2176 = vsel %vm204, %v2143, 0
        %v2179 = vsel %vm208, %v2172, 0
        %v2182 = vsel %vm208, %v2173, 0
        %v2185 = vsel %vm208, %v2174, 0
        %v2188 = vsel %vm208, %v2170, 0
        %2190 = vmatprep.subr.bf16.mxu0 %v2182
        %2191 = vmatpush1.bf16.msra.mxu0 %v2179
        %2192 = vmatprep.subr.bf16.mxu0 0
        %2193 = vmatpush1.bf16.msra.mxu0 0
        %2194 = vmatprep.subr.bf16.mxu0 0
        %2195 = vmatpush1.bf16.msra.mxu0 0
        %2196 = vmatprep.subr.bf16.mxu0 0
        %2197 = vmatpush1.bf16.msra.mxu0 0
        %2198 = vmatprep.subr.bf16.mxu0 0
        %2199 = vmatpush1.bf16.msra.mxu0 0
        %2200 = vmatprep.subr.bf16.mxu0 0
        %2201 = vmatpush1.bf16.msra.mxu0 0
        %2202 = vmatprep.subr.bf16.mxu0 0
        %2203 = vmatpush1.bf16.msra.mxu0 0
        %2204 = vmatprep.subr.bf16.mxu0 0
        %2205 = vmatpush1.bf16.msra.mxu0 0
        %2206 = vmatprep.subr.bf16.mxu0 0
        %2207 = vmatpush1.bf16.msra.mxu0 0
        %2208 = vmatprep.subr.bf16.mxu0 0
        %2209 = vmatpush1.bf16.msra.mxu0 0
        %2210 = vmatprep.subr.bf16.mxu0 0
        %2211 = vmatpush1.bf16.msra.mxu0 0
        %2212 = vmatprep.subr.bf16.mxu0 0
        %2213 = vmatpush1.bf16.msra.mxu0 0
        %2214 = vmatprep.subr.bf16.mxu0 0
        %2215 = vmatpush1.bf16.msra.mxu0 0
        %2216 = vmatprep.subr.bf16.mxu0 0
        %2217 = vmatpush1.bf16.msra.mxu0 0
        %2218 = vmatprep.subr.bf16.mxu0 0
        %2219 = vmatpush1.bf16.msra.mxu0 0
        %2220 = vmatprep.subr.bf16.mxu0 0
        %2221 = vmatpush1.bf16.msra.mxu0 0
        %2222 = vmatprep.mubr.bf16.mxu0 0
        %2223 = vmatmul.mubr.bf16.gmra.mrb[0].mxu0 %v2176
        %v2224 = vpop.f32.mrb[0].mxu0
        %v2225 = vadd.f32 0.0, %v2224
        %v2226 = vpop.f32.mrb[0].mxu0
        %v2227 = vadd.f32 0.0, %v2226
        %v2228 = vpop.f32.mrb[0].mxu0
        %v2229 = vpop.f32.mrb[0].mxu0
        %2230 = vdwg.mxu0
        %2231 = vmatprep.subr.bf16.mxu0 %v2188
        %2232 = vmatpush1.bf16.msra.mxu0 %v2185
        %2233 = vmatprep.subr.bf16.mxu0 0
        %2234 = vmatpush1.bf16.msra.mxu0 0
        %2235 = vmatprep.subr.bf16.mxu0 0
        %2236 = vmatpush1.bf16.msra.mxu0 0
        %2237 = vmatprep.subr.bf16.mxu0 0
        %2238 = vmatpush1.bf16.msra.mxu0 0
        %2239 = vmatprep.subr.bf16.mxu0 0
        %2240 = vmatpush1.bf16.msra.mxu0 0
        %2241 = vmatprep.subr.bf16.mxu0 0
        %2242 = vmatpush1.bf16.msra.mxu0 0
        %2243 = vmatprep.subr.bf16.mxu0 0
        %2244 = vmatpush1.bf16.msra.mxu0 0
        %2245 = vmatprep.subr.bf16.mxu0 0
        %2246 = vmatpush1.bf16.msra.mxu0 0
        %2247 = vmatprep.subr.bf16.mxu0 0
        %2248 = vmatpush1.bf16.msra.mxu0 0
        %2249 = vmatprep.subr.bf16.mxu0 0
        %2250 = vmatpush1.bf16.msra.mxu0 0
        %2251 = vmatprep.subr.bf16.mxu0 0
        %2252 = vmatpush1.bf16.msra.mxu0 0
        %2253 = vmatprep.subr.bf16.mxu0 0
        %2254 = vmatpush1.bf16.msra.mxu0 0
        %2255 = vmatprep.subr.bf16.mxu0 0
        %2256 = vmatpush1.bf16.msra.mxu0 0
        %2257 = vmatprep.subr.bf16.mxu0 0
        %2258 = vmatpush1.bf16.msra.mxu0 0
        %2259 = vmatprep.subr.bf16.mxu0 0
        %2260 = vmatpush1.bf16.msra.mxu0 0
        %2261 = vmatprep.subr.bf16.mxu0 0
        %2262 = vmatpush1.bf16.msra.mxu0 0
        %2263 = vmatprep.mubr.bf16.mxu0 0
        %2264 = vmatmul.mubr.bf16.gmra.mrb[0].mxu0 %v2176
        %v2265 = vpop.f32.mrb[0].mxu0
        %v2266 = vadd.f32 0.0, %v2265
        %v2267 = vpop.f32.mrb[0].mxu0
        %v2268 = vadd.f32 0.0, %v2267
        %v2269 = vpop.f32.mrb[0].mxu0
        %v2270 = vpop.f32.mrb[0].mxu0
        %2271 = vdwg.mxu0
        %v2272 = vadd.f32 %v2138, %v2225
        %v2273 = vadd.f32 %v2139, %v2227
        %v2274 = vadd.f32 %v2140, %v2266
        %v2275 = vadd.f32 %v2141, %v2268
        %v2276 = vld [vmem:[%s2] sm:$0xff]
        %2278 = vset.pattern.permute.xlu0 0
        %2279 = vperm.xlu0 %2278, %v2276
        %v2280 = vpop.permute.xlu0 %2279
        %v2282 = vadd.f32 %v2272, %v2280
        %v2283 = vadd.f32 %v2273, %v2280
        %v2284 = vadd.f32 %v2274, %v2280
        %v2285 = vadd.f32 %v2275, %v2280
        %2286 = vst [vmem:[%s163] sm:$0xff] %v2282
        %2287 = vst [vmem:[%s163 + $0x8] sm:$0xff] %v2283
        %2288 = vst [vmem:[%s163 + $0x10] sm:$0xff] %v2284
        %vm2289 = vcmask 277504
        %2290 = vst.msk [vmem:[%s163 + $0x18] sm:$0xff] %vm2289, %v2285
        %s2291 = sand.u32 %s93, 1
        %s2292 = scalar_lea.sflag [#allocation3], %s2291
        %s2293 = sand.u32 %s93, 1
        %s2294 = smul.addr %s2293, 32
        %s2295 = scalar_lea.vmem [#allocation2], %s2294
        // Predicated region
        $region33: #{tpu_custom_call.1} parent=31 // pred_check
          %p2296 = pneg %p103
        $region34: #{tpu_custom_call.1} parent=31 // pred_check_branch
          %2298 = sbr.rel (%p2296) target = $region36
        $region35: #{tpu_custom_call.1} parent=31 // pred_region
          %s2300 = ssub.s32 512, 512
          %2301 = vsyncadd %s2292, %s2300
          %s2302 = smul.addr %s17, 4
          %s2303 = smul.addr %s2302, 128
          %s2304 = scalar_lea.hbm %s3, %s2303
          %s2306 = sshll.u32 %s2295, 4
          %s2307 = int_to_ptr.vmem [resolvable:$true] %s2306
          %2309 = dma.vmem_to_hbm [thread:$0]  %s2307, 512, %s2304, %s2292
        $region36: #{tpu_custom_call.1} parent=31 // pred_fallthru
          _
      $region32: #{tpu_custom_call.1} parent=5 // pred_fallthru
        _
      %p2310 = scmp.le.s32.totalorder 2, %s12
      // Predicated region
      $region37: #{tpu_custom_call.1} parent=5 // pred_check
        %p2311 = pneg %p2310
      $region38: #{tpu_custom_call.1} parent=5 // pred_check_branch
        %2313 = sbr.rel (%p2311) target = $region40
      $region39: #{tpu_custom_call.1} parent=5 // pred_region
        %s2314 = ssub.s32 %s12, 2
        // Predicated region
        $region41: #{tpu_custom_call.1} parent=39 // pred_check
          %p2315 = pneg %p109
        $region42: #{tpu_custom_call.1} parent=39 // pred_check_branch
          %2317 = sbr.rel (%p2315) target = $region44
        $region43: #{tpu_custom_call.1} parent=39 // pred_region
          %s2318 = sand.u32 %s94, 1
          %s2319 = scalar_lea.sflag [#allocation3], %s2318
          %s2320 = sand.u32 %s94, 1
          %s2321 = smul.addr %s2320, 32
          %s2322 = scalar_lea.vmem [#allocation2], %s2321
          %2323 = dma.done %s2319, 512
        $region44: #{tpu_custom_call.1} parent=39 // pred_fallthru
          _
      $region40: #{tpu_custom_call.1} parent=5 // pred_fallthru
        _
    $region6: #{tpu_custom_call.1} parent=1 // loop_footer
      %s16 = sadd.s32 1, %s12
    $region7: #{tpu_custom_call.1} parent=1 // loop_footer_branch
      %11 = sbr.rel target = $region3
    $region8: #{tpu_custom_call.1} parent=1 // loop_exit
      _
    %2324 = vsyncpa [#allocation3], 1
    %s2325 = scalar_lea.sflag [#allocation3], 1
    %2326 = vsyncpa %s2325, 1

</llo_original>
